<compile_context>
chip_gen: v7x
topology: tpu7x:2x2x1
jax: 0.10.0
libtpu: 0.0.40
codegen_flags: <defaults>
</compile_context>

<pallas_src>
import functools
import math

import jax
import jax.numpy as jnp
import numpy as np
from jax import lax
from jax.experimental import pallas as pl
from jax.experimental.pallas import tpu as pltpu

# ----------------------------- configuration (small synthetic shapes) ----------------
BATCH = 2
IN_CH = 3
IMG = 32                      # stand-in for 224
NUM_FEATURES = 128            # stand-in for EfficientNet-B3's 1536 features
HIDDEN = 512                  # as in the module's classifier head
NUM_CLASSES = 3
NUM_CLASSES_PAD = 128         # lane-dense logits; sliced to NUM_CLASSES in the wrapper
KH = KW = 3
STRIDE = 2
PAD = 1
K_RAW = KH * KW * IN_CH       # 27
K_PAD = 32                    # zero-padded contraction dim (tile-aligned)
MAX_ROW_TILE = 2048           # raised per review; capped by the VMEM budget below
EPILOGUE_VMEM_BUDGET = 8 << 20  # f32 (thw, cout) acc/act temps + bf16 patch double-buffer


def _round_up(x, m):
    return (x + m - 1) // m * m


def _pick_row_tile(hw, cout):
    # Two (thw, cout) f32 temporaries (matmul acc + SiLU act) plus a double-buffered
    # (thw, K_PAD) bf16 patch tile must fit the budget (safe on v7x's scoped default).
    bytes_per_row = cout * 8 + 2 * K_PAD * 2
    cap = max(8, (EPILOGUE_VMEM_BUDGET // bytes_per_row) // 8 * 8)
    return min(MAX_ROW_TILE, cap, _round_up(hw, 8))


# ----------------------------- fused Pallas kernel ------------------------------------
def fused_conv_gap_head_kernel(p_ref, wc_ref, bc_ref, w1_ref, b1_ref, w2_ref, b2_ref,
                               o_ref, acc_ref, *, hw, thw, masked):
    """im2col-conv (bf16 MXU) + bias + SiLU + global-average-pool, then the classifier head
    (Linear -> ReLU -> Dropout(identity, eval) -> Linear) fused into the finalize step.

    Grid = (batch, hw_tiles). acc_ref is a VMEM scratch accumulator resident across the
    hw-tile ("arbitrary") axis; o_ref (lane-dense logits) is written only on the last tile.
    """
    ti = pl.program_id(1)
    last = pl.num_programs(1) - 1

    @pl.when(ti == 0)
    def _init():
        acc_ref[...] = jnp.zeros_like(acc_ref)

    # (thw, K_PAD) bf16 x (K_PAD, Cout) bf16 -> f32 on the MXU.
    z = jnp.dot(p_ref[...], wc_ref[...], preferred_element_type=jnp.float32)
    z = z + bc_ref[...]                                        # (1, Cout) broadcast, f32
    # SiLU = z * sigmoid(z); exp + approx reciprocal both go to the EUP slot.
    act = z * pl.reciprocal(1.0 + jnp.exp(-z), approx=True)

    if masked:
        # Only the tail tile can contain padded rows (which would contribute SiLU(bias) != 0).
        @pl.when(ti != last)
        def _accumulate_full():
            acc_ref[...] += jnp.sum(act, axis=0, keepdims=True)

        @pl.when(ti == last)
        def _accumulate_tail():
            row = ti * thw + lax.broadcasted_iota(jnp.int32, act.shape, 0)
            acc_ref[...] += jnp.sum(jnp.where(row < hw, act, 0.0), axis=0, keepdims=True)
    else:
        acc_ref[...] += jnp.sum(act, axis=0, keepdims=True)

    @pl.when(ti == last)
    def _finalize():
        pooled = (acc_ref[...] * (1.0 / hw)).astype(jnp.bfloat16)        # (1, Cout)
        h = jnp.dot(pooled, w1_ref[...], preferred_element_type=jnp.float32) + b1_ref[...]
        h = jnp.maximum(h, 0.0)                                          # ReLU (f32)
        # Dropout(p=0.5): identity at inference time.
        logits = jnp.dot(h.astype(jnp.bfloat16), w2_ref[...],
                         preferred_element_type=jnp.float32) + b2_ref[...]
        o_ref[...] = logits.astype(o_ref.dtype)                          # lane-dense (1, 128)


# ----------------------------- wrappers -----------------------------------------------
def _extract_patches_nhwc_bf16(x_nhwc):
    """im2col glue (plain JAX): (B,H,W,C) f32 -> (B, Ho*Wo, K_PAD) bf16.

    Input is cast to bf16 BEFORE extraction and the 27->32 pad is folded into the single
    concatenate, so the slab is materialized exactly once at half width.
    """
    b, h, w, _ = x_nhwc.shape
    xb = x_nhwc.astype(jnp.bfloat16)
    xp = jnp.pad(xb, ((0, 0), (PAD, PAD), (PAD, PAD), (0, 0)))
    ho = (h + 2 * PAD - KH) // STRIDE + 1
    wo = (w + 2 * PAD - KW) // STRIDE + 1
    cols = []
    for dy in range(KH):
        for dx in range(KW):
            cols.append(xp[:, dy:dy + STRIDE * ho:STRIDE, dx:dx + STRIDE * wo:STRIDE, :])
    cols.append(jnp.zeros((b, ho, wo, K_PAD - K_RAW), jnp.bfloat16))     # fold 27->32 pad
    patches = jnp.concatenate(cols, axis=-1)                             # (B, Ho, Wo, 32)
    return patches.reshape(b, ho * wo, K_PAD), ho * wo


def road_distress_forward(x_nchw, params):
    # PyTorch gives NCHW; kernels use channels-last.
    x_nhwc = jnp.transpose(x_nchw, (0, 2, 3, 1))
    patches, hw = _extract_patches_nhwc_bf16(x_nhwc)
    b = patches.shape[0]
    cout = params["w_conv"].shape[1]

    thw = _pick_row_tile(hw, cout)
    hw_pad = _round_up(hw, thw)
    if hw_pad != hw:
        patches = jnp.pad(patches, ((0, 0), (0, hw_pad - hw), (0, 0)))
    n_t = hw_pad // thw

    cost = pl.CostEstimate(
        flops=2 * b * hw_pad * K_PAD * cout
              + 2 * b * (cout * HIDDEN + HIDDEN * NUM_CLASSES_PAD),
        transcendentals=2 * b * hw_pad * cout,        # sigmoid = exp + reciprocal
        bytes_accessed=(b * hw_pad * K_PAD * 2) + (K_PAD * cout * 2) + (cout * 4)
                       + (cout * HIDDEN * 2) + (HIDDEN * 4)
                       + (HIDDEN * NUM_CLASSES_PAD * 2) + (NUM_CLASSES_PAD * 4)
                       + (b * NUM_CLASSES_PAD * 4),
    )

    const = lambda bi, ti: (0, 0)
    kernel = functools.partial(fused_conv_gap_head_kernel,
                               hw=hw, thw=thw, masked=(hw_pad != hw))
    logits_pad = pl.pallas_call(
        kernel,
        out_shape=jax.ShapeDtypeStruct((b, 1, NUM_CLASSES_PAD), jnp.float32),
        grid=(b, n_t),
        in_specs=[
            pl.BlockSpec((None, thw, K_PAD), lambda bi, ti: (bi, ti, 0)),   # streamed patches
            # Constant operands (conv + head weights/biases), DMA'd once.
            # TODO(synk): on v7x use pipeline_mode=pl.Buffered(1) here to skip double-buffering.
            pl.BlockSpec((K_PAD, cout), const),
            pl.BlockSpec((1, cout), const),
            pl.BlockSpec((cout, HIDDEN), const),
            pl.BlockSpec((1, HIDDEN), const),
            pl.BlockSpec((HIDDEN, NUM_CLASSES_PAD), const),
            pl.BlockSpec((1, NUM_CLASSES_PAD), const),
        ],
        # Same output block across the hw-tile axis; written only in the finalize step.
        out_specs=pl.BlockSpec((None, 1, NUM_CLASSES_PAD), lambda bi, ti: (bi, 0, 0)),
        scratch_shapes=[pltpu.VMEM((1, cout), jnp.float32)],               # GAP accumulator
        compiler_params=pltpu.CompilerParams(
            dimension_semantics=("parallel", "arbitrary")),
        cost_estimate=cost,
    )(patches, params["w_conv"], params["b_conv"],
      params["w1"], params["b1"], params["w2"], params["b2"])
    # TODO(synk): for B=1 inference on v7x, core-split the hw-tile axis instead of the batch axis.
    return logits_pad[:, 0, :NUM_CLASSES]                                   # (B, num_classes)


# ----------------------------- pure-JAX f32 reference (tolerance check) ---------------
def reference_forward(x_nchw, params):
    x_nhwc = jnp.transpose(x_nchw, (0, 2, 3, 1))
    patches, _ = _extract_patches_nhwc_bf16(x_nhwc)
    patches = patches.astype(jnp.float32)
    z = patches @ params["w_conv"].astype(jnp.float32) + params["b_conv"]
    act = z * jax.nn.sigmoid(z)
    pooled = jnp.mean(act, axis=1)
    h = jnp.maximum(pooled @ params["w1"].astype(jnp.float32) + params["b1"], 0.0)
    logits = h @ params["w2"].astype(jnp.float32) + params["b2"]
    return logits[:, :NUM_CLASSES]


# ----------------------------- deterministic parameter init ---------------------------
def init_params(key):
    k_conv, k1, k2 = jax.random.split(key, 3)
    # Backbone stem (stands in for pretrained weights): small normal init, K zero-padded to 32.
    w_conv = 0.05 * jax.random.normal(k_conv, (K_RAW, NUM_FEATURES), jnp.float32)
    w_conv = jnp.pad(w_conv, ((0, K_PAD - K_RAW), (0, 0))).astype(jnp.bfloat16)
    b_conv = jnp.zeros((1, NUM_FEATURES), jnp.float32)
    # Head: kaiming_normal_(mode='fan_out', nonlinearity='relu'), bias = 0 (as in the module).
    w1 = (math.sqrt(2.0 / HIDDEN)
          * jax.random.normal(k1, (NUM_FEATURES, HIDDEN), jnp.float32)).astype(jnp.bfloat16)
    b1 = jnp.zeros((1, HIDDEN), jnp.float32)
    w2 = math.sqrt(2.0 / NUM_CLASSES) * jax.random.normal(k2, (HIDDEN, NUM_CLASSES), jnp.float32)
    w2 = jnp.pad(w2, ((0, 0), (0, NUM_CLASSES_PAD - NUM_CLASSES))).astype(jnp.bfloat16)
    b2 = jnp.zeros((1, NUM_CLASSES_PAD), jnp.float32)
    return dict(w_conv=w_conv, b_conv=b_conv, w1=w1, b1=b1, w2=w2, b2=b2)


if __name__ == "__main__":
    key = jax.random.PRNGKey(0)
    k_x, k_p = jax.random.split(key)
    x = jax.random.normal(k_x, (BATCH, IN_CH, IMG, IMG), jnp.float32)   # NCHW like PyTorch
    params = init_params(k_p)

    out = jax.jit(road_distress_forward)(x, params)
    out = jax.block_until_ready(out)
    assert out.shape == (BATCH, NUM_CLASSES)

    # Loose tolerance: bf16 operands + approx-reciprocal SiLU vs f32 reference.
    ref = reference_forward(x, params)
    np.testing.assert_allclose(np.asarray(out), np.asarray(ref), rtol=1e-1, atol=2e-2)
    print("KERNEL_OK")
</pallas_src>

<mosaic_0001>
module attributes {stable_mosaic.version = 11 : i64} {
  func.func @fused_conv_gap_head_kernel(%arg0: i32, %arg1: i32, %arg2: memref<1x256x32xbf16, #tpu.memory_space<vmem>>, %arg3: memref<32x128xbf16, #tpu.memory_space<vmem>>, %arg4: memref<1x128xf32, #tpu.memory_space<vmem>>, %arg5: memref<128x512xbf16, #tpu.memory_space<vmem>>, %arg6: memref<1x512xf32, #tpu.memory_space<vmem>>, %arg7: memref<512x128xbf16, #tpu.memory_space<vmem>>, %arg8: memref<1x128xf32, #tpu.memory_space<vmem>>, %arg9: memref<1x1x128xf32, #tpu.memory_space<vmem>>, %arg10: memref<1x128xf32, #tpu.memory_space<vmem>>) attributes {dimension_semantics = [#tpu.dimension_semantics<parallel>, #tpu.dimension_semantics<arbitrary>], iteration_bounds = array<i64: 2, 1>, scalar_prefetch = 0 : i64, scratch_operands = 1 : i64, tpu.core_type = #tpu.core_type<tc>, window_params = [{transform_indices = @transform_0, window_bounds = array<i64: 1, 256, 32>}, {pipeline_mode = #tpu.pipeline_mode<synchronous>, transform_indices = @transform_1, window_bounds = array<i64: 32, 128>}, {pipeline_mode = #tpu.pipeline_mode<synchronous>, transform_indices = @transform_2, window_bounds = array<i64: 1, 128>}, {pipeline_mode = #tpu.pipeline_mode<synchronous>, transform_indices = @transform_3, window_bounds = array<i64: 128, 512>}, {pipeline_mode = #tpu.pipeline_mode<synchronous>, transform_indices = @transform_4, window_bounds = array<i64: 1, 512>}, {pipeline_mode = #tpu.pipeline_mode<synchronous>, transform_indices = @transform_5, window_bounds = array<i64: 512, 128>}, {pipeline_mode = #tpu.pipeline_mode<synchronous>, transform_indices = @transform_6, window_bounds = array<i64: 1, 128>}, {transform_indices = @transform_7, window_bounds = array<i64: 1, 1, 128>}]} {
    %c0_i32 = arith.constant 0 : i32
    %0 = arith.cmpi eq, %arg1, %c0_i32 : i32
    %1 = arith.extui %0 : i1 to i32
    %c0_i32_0 = arith.constant 0 : i32
    %2 = arith.cmpi ne, %1, %c0_i32_0 : i32
    scf.if %2 {
      %cst_16 = arith.constant 0.000000e+00 : f32
      %25 = vector.broadcast %cst_16 : f32 to vector<1x128xf32>
      %c0_17 = arith.constant 0 : index
      %c0_18 = arith.constant 0 : index
      %26 = vector.load %arg10[%c0_17, %c0_18] : memref<1x128xf32, #tpu.memory_space<vmem>>, vector<1x128xf32>
      tpu.vector_store %arg10[%c0_17, %c0_18], %25 {strides = array<i32>} : memref<1x128xf32, #tpu.memory_space<vmem>>, vector<1x128xf32>,
    } else {
    }
    %c0 = arith.constant 0 : index
    %c0_1 = arith.constant 0 : index
    %c0_2 = arith.constant 0 : index
    %3 = vector.load %arg2[%c0, %c0_1, %c0_2] : memref<1x256x32xbf16, #tpu.memory_space<vmem>>, vector<1x256x32xbf16>
    %4 = vector.shape_cast %3 : vector<1x256x32xbf16> to vector<256x32xbf16>
    %c0_3 = arith.constant 0 : index
    %c0_4 = arith.constant 0 : index
    %5 = vector.load %arg3[%c0_3, %c0_4] : memref<32x128xbf16, #tpu.memory_space<vmem>>, vector<32x128xbf16>
    %cst = arith.constant dense<0.000000e+00> : vector<256x128xf32>
    %6 = tpu.matmul %4, %5, %cst {dimension_numbers = #tpu.dot_dimension_numbers<[1], [0], [0], [1], [0, 0, 1, 1], [], []>} : vector<256x32xbf16>, vector<32x128xbf16>, vector<256x128xf32> -> vector<256x128xf32>
    %c0_5 = arith.constant 0 : index
    %c0_6 = arith.constant 0 : index
    %7 = vector.load %arg4[%c0_5, %c0_6] : memref<1x128xf32, #tpu.memory_space<vmem>>, vector<1x128xf32>
    %8 = vector.broadcast %7 : vector<1x128xf32> to vector<256x128xf32>
    %9 = arith.addf %6, %8 : vector<256x128xf32>
    %cst_7 = arith.constant 0.000000e+00 : f32
    %10 = vector.broadcast %cst_7 : f32 to vector<256x128xf32>
    %11 = arith.subf %10, %9 : vector<256x128xf32>
    %12 = math.exp %11 : vector<256x128xf32>
    %cst_8 = arith.constant 1.000000e+00 : f32
    %13 = vector.broadcast %cst_8 : f32 to vector<256x128xf32>
    %14 = arith.addf %13, %12 : vector<256x128xf32>
    %15 = tpu.reciprocal %14 {approx = true} : vector<256x128xf32> -> vector<256x128xf32>
    %16 = arith.mulf %9, %15 : vector<256x128xf32>
    %c0_9 = arith.constant 0 : index
    %c0_10 = arith.constant 0 : index
    %17 = vector.load %arg10[%c0_9, %c0_10] : memref<1x128xf32, #tpu.memory_space<vmem>>, vector<1x128xf32>
    %cst_11 = arith.constant dense<0.000000e+00> : vector<128xf32>
    %18 = vector.multi_reduction <add>, %16, %cst_11 [0] : vector<256x128xf32> to vector<128xf32>
    %19 = vector.shape_cast %18 : vector<128xf32> to vector<1x128xf32>
    %20 = arith.addf %17, %19 : vector<1x128xf32>
    %c0_12 = arith.constant 0 : index
    %c0_13 = arith.constant 0 : index
    %21 = vector.load %arg10[%c0_12, %c0_13] : memref<1x128xf32, #tpu.memory_space<vmem>>, vector<1x128xf32>
    tpu.vector_store %arg10[%c0_12, %c0_13], %20 {strides = array<i32>} : memref<1x128xf32, #tpu.memory_space<vmem>>, vector<1x128xf32>,
    %c0_i32_14 = arith.constant 0 : i32
    %22 = arith.cmpi eq, %arg1, %c0_i32_14 : i32
    %23 = arith.extui %22 : i1 to i32
    %c0_i32_15 = arith.constant 0 : i32
    %24 = arith.cmpi ne, %23, %c0_i32_15 : i32
    scf.if %24 {
      %c0_16 = arith.constant 0 : index
      %c0_17 = arith.constant 0 : index
      %25 = vector.load %arg10[%c0_16, %c0_17] : memref<1x128xf32, #tpu.memory_space<vmem>>, vector<1x128xf32>
      %cst_18 = arith.constant 3.906250e-03 : f32
      %26 = vector.broadcast %cst_18 : f32 to vector<1x128xf32>
      %27 = arith.mulf %25, %26 : vector<1x128xf32>
      %28 = arith.truncf %27 : vector<1x128xf32> to vector<1x128xbf16>
      %c0_19 = arith.constant 0 : index
      %c0_20 = arith.constant 0 : index
      %29 = vector.load %arg5[%c0_19, %c0_20] : memref<128x512xbf16, #tpu.memory_space<vmem>>, vector<128x512xbf16>
      %cst_21 = arith.constant dense<0.000000e+00> : vector<1x512xf32>
      %30 = tpu.matmul %28, %29, %cst_21 {dimension_numbers = #tpu.dot_dimension_numbers<[1], [0], [0], [1], [0, 0, 1, 1], [], []>} : vector<1x128xbf16>, vector<128x512xbf16>, vector<1x512xf32> -> vector<1x512xf32>
      %c0_22 = arith.constant 0 : index
      %c0_23 = arith.constant 0 : index
      %31 = vector.load %arg6[%c0_22, %c0_23] : memref<1x512xf32, #tpu.memory_space<vmem>>, vector<1x512xf32>
      %32 = arith.addf %30, %31 : vector<1x512xf32>
      %cst_24 = arith.constant 0.000000e+00 : f32
      %33 = vector.broadcast %cst_24 : f32 to vector<1x512xf32>
      %34 = arith.maximumf %32, %33 : vector<1x512xf32>
      %35 = arith.truncf %34 : vector<1x512xf32> to vector<1x512xbf16>
      %c0_25 = arith.constant 0 : index
      %c0_26 = arith.constant 0 : index
      %36 = vector.load %arg7[%c0_25, %c0_26] : memref<512x128xbf16, #tpu.memory_space<vmem>>, vector<512x128xbf16>
      %cst_27 = arith.constant dense<0.000000e+00> : vector<1x128xf32>
      %37 = tpu.matmul %35, %36, %cst_27 {dimension_numbers = #tpu.dot_dimension_numbers<[1], [0], [0], [1], [0, 0, 1, 1], [], []>} : vector<1x512xbf16>, vector<512x128xbf16>, vector<1x128xf32> -> vector<1x128xf32>
      %c0_28 = arith.constant 0 : index
      %c0_29 = arith.constant 0 : index
      %38 = vector.load %arg8[%c0_28, %c0_29] : memref<1x128xf32, #tpu.memory_space<vmem>>, vector<1x128xf32>
      %39 = arith.addf %37, %38 : vector<1x128xf32>
      %c0_30 = arith.constant 0 : index
      %c0_31 = arith.constant 0 : index
      %c0_32 = arith.constant 0 : index
      %40 = vector.load %arg9[%c0_30, %c0_31, %c0_32] : memref<1x1x128xf32, #tpu.memory_space<vmem>>, vector<1x1x128xf32>
      %41 = vector.shape_cast %40 : vector<1x1x128xf32> to vector<1x128xf32>
      %42 = vector.shape_cast %39 : vector<1x128xf32> to vector<1x1x128xf32>
      tpu.vector_store %arg9[%c0_30, %c0_31, %c0_32], %42 {strides = array<i32>} : memref<1x1x128xf32, #tpu.memory_space<vmem>>, vector<1x1x128xf32>,
    } else {
    }
    return
  }
  func.func @transform_0(%arg0: i32, %arg1: i32) -> (i32, i32, i32) {
    %c0_i32 = arith.constant 0 : i32
    %c0_i32_0 = arith.constant 0 : i32
    return %arg0, %arg1, %c0_i32 : i32, i32, i32
  }
  func.func @transform_1(%arg0: i32, %arg1: i32) -> (i32, i32) {
    %c0_i32 = arith.constant 0 : i32
    %c0_i32_0 = arith.constant 0 : i32
    %c0_i32_1 = arith.constant 0 : i32
    return %c0_i32, %c0_i32_0 : i32, i32
  }
  func.func @transform_2(%arg0: i32, %arg1: i32) -> (i32, i32) {
    %c0_i32 = arith.constant 0 : i32
    %c0_i32_0 = arith.constant 0 : i32
    %c0_i32_1 = arith.constant 0 : i32
    return %c0_i32, %c0_i32_0 : i32, i32
  }
  func.func @transform_3(%arg0: i32, %arg1: i32) -> (i32, i32) {
    %c0_i32 = arith.constant 0 : i32
    %c0_i32_0 = arith.constant 0 : i32
    %c0_i32_1 = arith.constant 0 : i32
    return %c0_i32, %c0_i32_0 : i32, i32
  }
  func.func @transform_4(%arg0: i32, %arg1: i32) -> (i32, i32) {
    %c0_i32 = arith.constant 0 : i32
    %c0_i32_0 = arith.constant 0 : i32
    %c0_i32_1 = arith.constant 0 : i32
    return %c0_i32, %c0_i32_0 : i32, i32
  }
  func.func @transform_5(%arg0: i32, %arg1: i32) -> (i32, i32) {
    %c0_i32 = arith.constant 0 : i32
    %c0_i32_0 = arith.constant 0 : i32
    %c0_i32_1 = arith.constant 0 : i32
    return %c0_i32, %c0_i32_0 : i32, i32
  }
  func.func @transform_6(%arg0: i32, %arg1: i32) -> (i32, i32) {
    %c0_i32 = arith.constant 0 : i32
    %c0_i32_0 = arith.constant 0 : i32
    %c0_i32_1 = arith.constant 0 : i32
    return %c0_i32, %c0_i32_0 : i32, i32
  }
  func.func @transform_7(%arg0: i32, %arg1: i32) -> (i32, i32, i32) {
    %c0_i32 = arith.constant 0 : i32
    %c0_i32_0 = arith.constant 0 : i32
    %c0_i32_1 = arith.constant 0 : i32
    return %arg0, %c0_i32, %c0_i32_0 : i32, i32, i32
  }
}

</mosaic_0001>

<llo_original>
// kernel: road_distress_forward.1
$region0: #{road_distress_forward.1}
  #allocation0 [shape = 'u32[]', space=smem, size = 0x4, offset = 0x4, fixed_abs, tag = 'smem constant byte address 0x4 - core index']
  #allocation1 [shape = 'u32[144,128]{1,0:T(1,128)}', space=vmem, size = 0x12000, scoped, tag = 'internal scratch']
  #allocation2 [shape = 'f32[1,128]{1,0:T(1,128)}', space=vmem, size = 0x200, scoped, tag = 'scratch operand']
  %s0 = inlined_call_operand.vmem [shape: bf16[2,256,32], index: 0, kind: input, shape index: {}]
  %s1 = inlined_call_operand.vmem [shape: bf16[32,128], index: 1, kind: input, shape index: {}]
  %s2 = inlined_call_operand.vmem [shape: f32[1,128], index: 2, kind: input, shape index: {}]
  %s3 = inlined_call_operand.vmem [shape: bf16[128,512], index: 3, kind: input, shape index: {}]
  %s4 = inlined_call_operand.vmem [shape: f32[1,512], index: 4, kind: input, shape index: {}]
  %s5 = inlined_call_operand.vmem [shape: bf16[512,128], index: 5, kind: input, shape index: {}]
  %s6 = inlined_call_operand.vmem [shape: f32[1,128], index: 6, kind: input, shape index: {}]
  %s7 = inlined_call_operand.hbm [shape: f32[2,1,128], index: 7, kind: output, shape index: {}]
  %s8 = sld [smem:[#allocation0]]
  $region69: #{road_distress_forward.1} parent=0
    _
  %s10 = ssub.s32 1, %s8
  %s11 = scalar_select 0, %s10, %s8
  $region1: #{road_distress_forward.1} parent=0
    #allocation3 [shape = 'u8[1024]{0}', space=vmem, size = 0x400, scoped, tag = 'output window, operand 0']
    #allocation4 [shape = 's32[2]{0}', space=sflag, size = 0x8, scoped, tag = 'scoped memory for road_distress_forward.1']
    %12 = vsyncpa [#allocation4], 0
    %s13 = scalar_lea.sflag [#allocation4], 1
    %14 = vsyncpa %s13, 0
    loop: start=0, step=1, limit=4
    $region2: #{road_distress_forward.1} parent=1 // loop_pre_header
      _
    $region3: #{road_distress_forward.1} parent=1 // loop_header
      %s16 = sphi 0, %s20
      %p17 = scmp.ge.s32.totalorder %s16, 4
      %s23 = sphi 0, %s35
      %s24 = sphi 0, %s31
      %s25 = sphi 0, %s23
      %s26 = sphi 0, %s24
      %s27 = sphi 0, %s25
      %s28 = sphi 0, %s26
      %s40 = sphi 0, %s42
      %s43 = sphi 0, %s40
      %s44 = sphi 0, %s43
      %s60 = sphi 0, %s44
      %s64 = sphi 0, %s64
      %s66 = sphi 0, %s64
      %s67 = sphi 0, %s66
      %s81 = sphi 0, %s67
      %s85 = sphi 0, %s85
      %s87 = sphi 0, %s85
      %s88 = sphi 0, %s87
      %s102 = sphi 0, %s88
      %s106 = sphi 0, %s106
      %s108 = sphi 0, %s106
      %s109 = sphi 0, %s108
      %s123 = sphi 0, %s109
      %s127 = sphi 0, %s127
      %s129 = sphi 0, %s127
      %s130 = sphi 0, %s129
      %s144 = sphi 0, %s130
      %s148 = sphi 0, %s148
      %s150 = sphi 0, %s148
      %s151 = sphi 0, %s150
      %s165 = sphi 0, %s151
      %s169 = sphi 0, %s169
      %s171 = sphi 0, %s169
      %s172 = sphi 0, %s171
      %s186 = sphi 0, %s172
      %s192 = sphi 0, %s194
      %s195 = sphi 0, %s192
      %s196 = sphi 0, %s195
      %s212 = sphi 0, %s196
    $region4: #{road_distress_forward.1} parent=1 // loop_header_branch
      %19 = sbr.rel (%p17) target = $region8
    $region5: #{road_distress_forward.1} parent=1 // loop_body
      %s21 = ssub.s32 %s16, 1
      %s22 = ssub.s32 %s16, 2
      %s29 = sadd.s32 1, %s24
      %p30 = scmp.ge.s32.totalorder %s29, 1
      %s31 = scalar_select %p30, 0, %s29
      %s32 = sadd.s32 1, %s23
      %s33 = scalar_select %p30, %s32, %s23
      %p34 = scmp.ge.s32.totalorder %s33, 2
      %s35 = scalar_select %p34, 0, %s33
      %s36 = ssub.s32 %s23, %s35
      %s37 = ssub.s32 %s24, %s31
      %s38 = sor.u32 %s36, %s37
      %p39 = scmp.eq.s32.totalorder %s38, 0
      %s41 = sadd.s32 %s40, 1
      %s42 = scalar_select %p39, %s40, %s41
      %p45 = pneg %p39
      %p46 = scmp.eq.s32.totalorder %s16, 1
      %p47 = por %p45, %p46
      %p48 = scmp.ne.s32.totalorder %s40, %s43
      %p49 = scmp.eq.s32.totalorder %s16, 0
      %p50 = por %p48, %p49
      %p51 = scmp.ne.s32.totalorder %s40, %s43
      %p52 = scmp.eq.s32.totalorder %s21, 1
      %p53 = por %p51, %p52
      %p54 = scmp.ne.s32.totalorder %s43, %s44
      %p55 = scmp.eq.s32.totalorder %s21, 0
      %p56 = por %p54, %p55
      %p57 = scmp.ne.s32.totalorder %s43, %s44
      %p58 = scmp.eq.s32.totalorder %s22, 1
      %p59 = por %p57, %p58
      %p61 = scmp.ne.s32.totalorder %s44, %s60
      %p62 = scmp.eq.s32.totalorder %s22, 0
      %p63 = por %p61, %p62
      %s65 = sadd.s32 %s64, 1
      %p68 = scmp.eq.s32.totalorder %s16, 1
      %p69 = scmp.ne.s32.totalorder %s64, %s66
      %p70 = scmp.eq.s32.totalorder %s16, 0
      %p71 = por %p69, %p70
      %p72 = scmp.ne.s32.totalorder %s64, %s66
      %p73 = scmp.eq.s32.totalorder %s21, 1
      %p74 = por %p72, %p73
      %p75 = scmp.ne.s32.totalorder %s66, %s67
      %p76 = scmp.eq.s32.totalorder %s21, 0
      %p77 = por %p75, %p76
      %p78 = scmp.ne.s32.totalorder %s66, %s67
      %p79 = scmp.eq.s32.totalorder %s22, 1
      %p80 = por %p78, %p79
      %p82 = scmp.ne.s32.totalorder %s67, %s81
      %p83 = scmp.eq.s32.totalorder %s22, 0
      %p84 = por %p82, %p83
      %s86 = sadd.s32 %s85, 1
      %p89 = scmp.eq.s32.totalorder %s16, 1
      %p90 = scmp.ne.s32.totalorder %s85, %s87
      %p91 = scmp.eq.s32.totalorder %s16, 0
      %p92 = por %p90, %p91
      %p93 = scmp.ne.s32.totalorder %s85, %s87
      %p94 = scmp.eq.s32.totalorder %s21, 1
      %p95 = por %p93, %p94
      %p96 = scmp.ne.s32.totalorder %s87, %s88
      %p97 = scmp.eq.s32.totalorder %s21, 0
      %p98 = por %p96, %p97
      %p99 = scmp.ne.s32.totalorder %s87, %s88
      %p100 = scmp.eq.s32.totalorder %s22, 1
      %p101 = por %p99, %p100
      %p103 = scmp.ne.s32.totalorder %s88, %s102
      %p104 = scmp.eq.s32.totalorder %s22, 0
      %p105 = por %p103, %p104
      %s107 = sadd.s32 %s106, 1
      %p110 = scmp.eq.s32.totalorder %s16, 1
      %p111 = scmp.ne.s32.totalorder %s106, %s108
      %p112 = scmp.eq.s32.totalorder %s16, 0
      %p113 = por %p111, %p112
      %p114 = scmp.ne.s32.totalorder %s106, %s108
      %p115 = scmp.eq.s32.totalorder %s21, 1
      %p116 = por %p114, %p115
      %p117 = scmp.ne.s32.totalorder %s108, %s109
      %p118 = scmp.eq.s32.totalorder %s21, 0
      %p119 = por %p117, %p118
      %p120 = scmp.ne.s32.totalorder %s108, %s109
      %p121 = scmp.eq.s32.totalorder %s22, 1
      %p122 = por %p120, %p121
      %p124 = scmp.ne.s32.totalorder %s109, %s123
      %p125 = scmp.eq.s32.totalorder %s22, 0
      %p126 = por %p124, %p125
      %s128 = sadd.s32 %s127, 1
      %p131 = scmp.eq.s32.totalorder %s16, 1
      %p132 = scmp.ne.s32.totalorder %s127, %s129
      %p133 = scmp.eq.s32.totalorder %s16, 0
      %p134 = por %p132, %p133
      %p135 = scmp.ne.s32.totalorder %s127, %s129
      %p136 = scmp.eq.s32.totalorder %s21, 1
      %p137 = por %p135, %p136
      %p138 = scmp.ne.s32.totalorder %s129, %s130
      %p139 = scmp.eq.s32.totalorder %s21, 0
      %p140 = por %p138, %p139
      %p141 = scmp.ne.s32.totalorder %s129, %s130
      %p142 = scmp.eq.s32.totalorder %s22, 1
      %p143 = por %p141, %p142
      %p145 = scmp.ne.s32.totalorder %s130, %s144
      %p146 = scmp.eq.s32.totalorder %s22, 0
      %p147 = por %p145, %p146
      %s149 = sadd.s32 %s148, 1
      %p152 = scmp.eq.s32.totalorder %s16, 1
      %p153 = scmp.ne.s32.totalorder %s148, %s150
      %p154 = scmp.eq.s32.totalorder %s16, 0
      %p155 = por %p153, %p154
      %p156 = scmp.ne.s32.totalorder %s148, %s150
      %p157 = scmp.eq.s32.totalorder %s21, 1
      %p158 = por %p156, %p157
      %p159 = scmp.ne.s32.totalorder %s150, %s151
      %p160 = scmp.eq.s32.totalorder %s21, 0
      %p161 = por %p159, %p160
      %p162 = scmp.ne.s32.totalorder %s150, %s151
      %p163 = scmp.eq.s32.totalorder %s22, 1
      %p164 = por %p162, %p163
      %p166 = scmp.ne.s32.totalorder %s151, %s165
      %p167 = scmp.eq.s32.totalorder %s22, 0
      %p168 = por %p166, %p167
      %s170 = sadd.s32 %s169, 1
      %p173 = scmp.eq.s32.totalorder %s16, 1
      %p174 = scmp.ne.s32.totalorder %s169, %s171
      %p175 = scmp.eq.s32.totalorder %s16, 0
      %p176 = por %p174, %p175
      %p177 = scmp.ne.s32.totalorder %s169, %s171
      %p178 = scmp.eq.s32.totalorder %s21, 1
      %p179 = por %p177, %p178
      %p180 = scmp.ne.s32.totalorder %s171, %s172
      %p181 = scmp.eq.s32.totalorder %s21, 0
      %p182 = por %p180, %p181
      %p183 = scmp.ne.s32.totalorder %s171, %s172
      %p184 = scmp.eq.s32.totalorder %s22, 1
      %p185 = por %p183, %p184
      %p187 = scmp.ne.s32.totalorder %s172, %s186
      %p188 = scmp.eq.s32.totalorder %s22, 0
      %p189 = por %p187, %p188
      %s190 = ssub.s32 %s23, %s35
      %p191 = scmp.eq.s32.totalorder %s190, 0
      %s193 = sadd.s32 %s192, 1
      %s194 = scalar_select %p191, %s192, %s193
      %p197 = pneg %p191
      %p198 = scmp.eq.s32.totalorder %s16, 1
      %p199 = por %p197, %p198
      %p200 = scmp.ne.s32.totalorder %s192, %s195
      %p201 = scmp.eq.s32.totalorder %s16, 0
      %p202 = por %p200, %p201
      %p203 = scmp.ne.s32.totalorder %s192, %s195
      %p204 = scmp.eq.s32.totalorder %s21, 1
      %p205 = por %p203, %p204
      %p206 = scmp.ne.s32.totalorder %s195, %s196
      %p207 = scmp.eq.s32.totalorder %s21, 0
      %p208 = por %p206, %p207
      %p209 = scmp.ne.s32.totalorder %s195, %s196
      %p210 = scmp.eq.s32.totalorder %s22, 1
      %p211 = por %p209, %p210
      %p213 = scmp.ne.s32.totalorder %s196, %s212
      %p214 = scmp.eq.s32.totalorder %s22, 0
      %p215 = por %p213, %p214
      %p216 = scmp.le.s32.totalorder 1, %s16
      %p217 = scmp.lt.s32.totalorder %s16, 3
      %p218 = pnand %p216, %p217
      %p219 = pneg %p218
      // Predicated region
      $region9: #{road_distress_forward.1} parent=5 // pred_check
        _
      $region10: #{road_distress_forward.1} parent=5 // pred_check_branch
        %221 = sbr.rel (%p218) target = $region12
      $region11: #{road_distress_forward.1} parent=5 // pred_region
        %s222 = ssub.s32 %s16, 1
        // Predicated region
        $region13: #{road_distress_forward.1} parent=11 // pred_check
          %p223 = pneg %p77
        $region14: #{road_distress_forward.1} parent=11 // pred_check_branch
          %225 = sbr.rel (%p223) target = $region16
        $region15: #{road_distress_forward.1} parent=11 // pred_region
          _
        $region16: #{road_distress_forward.1} parent=11 // pred_fallthru
          _
        // Predicated region
        $region17: #{road_distress_forward.1} parent=11 // pred_check
          %p226 = pneg %p98
        $region18: #{road_distress_forward.1} parent=11 // pred_check_branch
          %228 = sbr.rel (%p226) target = $region20
        $region19: #{road_distress_forward.1} parent=11 // pred_region
          _
        $region20: #{road_distress_forward.1} parent=11 // pred_fallthru
          _
        // Predicated region
        $region21: #{road_distress_forward.1} parent=11 // pred_check
          %p229 = pneg %p119
        $region22: #{road_distress_forward.1} parent=11 // pred_check_branch
          %231 = sbr.rel (%p229) target = $region24
        $region23: #{road_distress_forward.1} parent=11 // pred_region
          _
        $region24: #{road_distress_forward.1} parent=11 // pred_fallthru
          _
        // Predicated region
        $region25: #{road_distress_forward.1} parent=11 // pred_check
          %p232 = pneg %p140
        $region26: #{road_distress_forward.1} parent=11 // pred_check_branch
          %234 = sbr.rel (%p232) target = $region28
        $region27: #{road_distress_forward.1} parent=11 // pred_region
          _
        $region28: #{road_distress_forward.1} parent=11 // pred_fallthru
          _
        // Predicated region
        $region29: #{road_distress_forward.1} parent=11 // pred_check
          %p235 = pneg %p161
        $region30: #{road_distress_forward.1} parent=11 // pred_check_branch
          %237 = sbr.rel (%p235) target = $region32
        $region31: #{road_distress_forward.1} parent=11 // pred_region
          _
        $region32: #{road_distress_forward.1} parent=11 // pred_fallthru
          _
        // Predicated region
        $region33: #{road_distress_forward.1} parent=11 // pred_check
          %p238 = pneg %p182
        $region34: #{road_distress_forward.1} parent=11 // pred_check_branch
          %240 = sbr.rel (%p238) target = $region36
        $region35: #{road_distress_forward.1} parent=11 // pred_region
          _
        $region36: #{road_distress_forward.1} parent=11 // pred_fallthru
          _
      $region12: #{road_distress_forward.1} parent=5 // pred_fallthru
        _
      %p241 = scmp.lt.s32.totalorder %s16, 2
      // Predicated region
      $region37: #{road_distress_forward.1} parent=5 // pred_check
        %p242 = pneg %p241
      $region38: #{road_distress_forward.1} parent=5 // pred_check_branch
        %244 = sbr.rel (%p242) target = $region40
      $region39: #{road_distress_forward.1} parent=5 // pred_region
        // Predicated region
        $region41: #{road_distress_forward.1} parent=39 // pred_check
          %p245 = pneg %p50
        $region42: #{road_distress_forward.1} parent=39 // pred_check_branch
          %247 = sbr.rel (%p245) target = $region44
        $region43: #{road_distress_forward.1} parent=39 // pred_region
          %s248 = smul.u32 32, %s24
          %p249 = scmp.lt.s32.totalorder %s23, 1
          %s250 = scalar_select %p249, %s23, 1
          %p251 = scmp.lt.s32.totalorder %s248, 31
          %s252 = scalar_select %p251, %s248, 31
          %s253 = smul.addr %s250, 32
          %s254 = sadd.s32 %s252, %s253
          %s255 = smul.addr %s254, 4
          %s256 = scalar_lea.vmem %s0, %s255
          %s257 = smul.u32 32, %s24
        $region44: #{road_distress_forward.1} parent=39 // pred_fallthru
          _
      $region40: #{road_distress_forward.1} parent=5 // pred_fallthru
        _
      %p258 = scmp.le.s32.totalorder 1, %s16
      %p259 = scmp.lt.s32.totalorder %s16, 3
      %p260 = pnand %p258, %p259
      %p261 = pneg %p260
      // Predicated region
      $region45: #{road_distress_forward.1} parent=5 // pred_check
        _
      $region46: #{road_distress_forward.1} parent=5 // pred_check_branch
        %263 = sbr.rel (%p260) target = $region48
      $region47: #{road_distress_forward.1} parent=5 // pred_region
        %s264 = ssub.s32 %s16, 1
        %s265 = smul.u32 32, %s26
        %p266 = scmp.lt.s32.totalorder %s25, 1
        %s267 = scalar_select %p266, %s25, 1
        %p268 = scmp.lt.s32.totalorder %s265, 31
        %s269 = scalar_select %p268, %s265, 31
        %s270 = smul.addr %s267, 32
        %s271 = sadd.s32 %s269, %s270
        %s272 = smul.addr %s271, 4
        %s273 = scalar_lea.vmem %s0, %s272
        %p274 = pneg %p56
        %p275 = pneg %p53
        %p276 = pneg %p77
        %p277 = pneg %p74
        %p278 = pneg %p98
        %p279 = pneg %p95
        %p280 = pneg %p119
        %p281 = pneg %p116
        %p282 = pneg %p140
        %p283 = pneg %p137
        %p284 = pneg %p161
        %p285 = pneg %p158
        %p286 = pneg %p182
        %p287 = pneg %p179
        %p288 = pneg %p208
        %p289 = pneg %p205
        %s290 = sand.u32 %s195, 1
        %s291 = scalar_lea.sflag [#allocation4], %s290
        %s292 = sand.u32 %s195, 1
        %s293 = scalar_lea.vmem [#allocation3], %s292
        %s294 = smul.u32 32, %s26
        %p295 = scmp.lt.s32.totalorder %s25, 1
        %s296 = scalar_select %p295, %s25, 1
        %p297 = scmp.lt.s32.totalorder %s294, 31
        %s298 = scalar_select %p297, %s294, 31
        %s299 = smul.addr %s296, 32
        %s300 = sadd.s32 %s298, %s299
        %s301 = smul.addr %s300, 4
        %s302 = scalar_lea.vmem %s0, %s301
        %s303 = smul.u32 32, %s26
        %p305 = scmp.eq.s32.totalorder %s26, 0
        // Predicated region
        $region49: #{road_distress_forward.1} parent=47 // pred_check
          %p306 = pneg %p305
        $region50: #{road_distress_forward.1} parent=47 // pred_check_branch
          %308 = sbr.rel (%p306) target = $region52
        $region51: #{road_distress_forward.1} parent=47 // pred_region
          %309 = vst [vmem:[#allocation2] sm:$0x1] 0.0
        $region52: #{road_distress_forward.1} parent=47 // pred_fallthru
          _
        %v310 = vld [vmem:[%s302] sm:$0xf]
        %v311 = vld [vmem:[%s302 + $0x4] sm:$0xf]
        %v312 = vld [vmem:[%s302 + $0x8] sm:$0xf]
        %v313 = vld [vmem:[%s302 + $0xc] sm:$0xf]
        %v314 = vld [vmem:[%s302 + $0x10] sm:$0xf]
        %v315 = vld [vmem:[%s302 + $0x14] sm:$0xf]
        %v316 = vld [vmem:[%s302 + $0x18] sm:$0xf]
        %v317 = vld [vmem:[%s302 + $0x1c] sm:$0xf]
        %v318 = vld [vmem:[%s302 + $0x20] sm:$0xf]
        %v319 = vld [vmem:[%s302 + $0x24] sm:$0xf]
        %v320 = vld [vmem:[%s302 + $0x28] sm:$0xf]
        %v321 = vld [vmem:[%s302 + $0x2c] sm:$0xf]
        %v322 = vld [vmem:[%s302 + $0x30] sm:$0xf]
        %v323 = vld [vmem:[%s302 + $0x34] sm:$0xf]
        %v324 = vld [vmem:[%s302 + $0x38] sm:$0xf]
        %v325 = vld [vmem:[%s302 + $0x3c] sm:$0xf]
        %v326 = vld [vmem:[%s302 + $0x40] sm:$0xf]
        %v327 = vld [vmem:[%s302 + $0x44] sm:$0xf]
        %v328 = vld [vmem:[%s302 + $0x48] sm:$0xf]
        %v329 = vld [vmem:[%s302 + $0x4c] sm:$0xf]
        %v330 = vld [vmem:[%s302 + $0x50] sm:$0xf]
        %v331 = vld [vmem:[%s302 + $0x54] sm:$0xf]
        %v332 = vld [vmem:[%s302 + $0x58] sm:$0xf]
        %v333 = vld [vmem:[%s302 + $0x5c] sm:$0xf]
        %v334 = vld [vmem:[%s302 + $0x60] sm:$0xf]
        %v335 = vld [vmem:[%s302 + $0x64] sm:$0xf]
        %v336 = vld [vmem:[%s302 + $0x68] sm:$0xf]
        %v337 = vld [vmem:[%s302 + $0x6c] sm:$0xf]
        %v338 = vld [vmem:[%s302 + $0x70] sm:$0xf]
        %v339 = vld [vmem:[%s302 + $0x74] sm:$0xf]
        %v340 = vld [vmem:[%s302 + $0x78] sm:$0xf]
        %v341 = vld [vmem:[%s302 + $0x7c] sm:$0xf]
        %v342 = vld [vmem:[%s1] sm:$0xf]
        %v343 = vld [vmem:[%s1 + $0x4] sm:$0xf]
        %v344 = vld [vmem:[%s1 + $0x8] sm:$0xf]
        %v345 = vld [vmem:[%s1 + $0xc] sm:$0xf]
        %v346 = vld [vmem:[%s2] sm:$0x1]
        %v348 = vlaneseq
        %v349 = vshrl.u32 %v348, 7
        %v350 = vsub.s32 0, %v349
        %v351 = vrot.slane %v346, %v350
        %v385 = vunpack.c.l.b16 %v310
        %v386 = vunpack.c.l.b16 %v311
        %v387 = vunpack.c.l.b16 %v312
        %v388 = vunpack.c.l.b16 %v313
        %v389 = vunpack.c.l.b16 %v314
        %v390 = vunpack.c.l.b16 %v315
        %v391 = vunpack.c.l.b16 %v316
        %v392 = vunpack.c.l.b16 %v317
        %v393 = vunpack.c.l.b16 %v318
        %v394 = vunpack.c.l.b16 %v319
        %v395 = vunpack.c.l.b16 %v320
        %v396 = vunpack.c.l.b16 %v321
        %v397 = vunpack.c.l.b16 %v322
        %v398 = vunpack.c.l.b16 %v323
        %v399 = vunpack.c.l.b16 %v324
        %v400 = vunpack.c.l.b16 %v325
        %v401 = vunpack.c.l.b16 %v326
        %v402 = vunpack.c.l.b16 %v327
        %v403 = vunpack.c.l.b16 %v328
        %v404 = vunpack.c.l.b16 %v329
        %v405 = vunpack.c.l.b16 %v330
        %v406 = vunpack.c.l.b16 %v331
        %v407 = vunpack.c.l.b16 %v332
        %v408 = vunpack.c.l.b16 %v333
        %v409 = vunpack.c.l.b16 %v334
        %v410 = vunpack.c.l.b16 %v335
        %v411 = vunpack.c.l.b16 %v336
        %v412 = vunpack.c.l.b16 %v337
        %v413 = vunpack.c.l.b16 %v338
        %v414 = vunpack.c.l.b16 %v339
        %v415 = vunpack.c.l.b16 %v340
        %v416 = vunpack.c.l.b16 %v341
        %v417 = vpack.c.b16 %v386, %v385
        %v418 = vpack.c.b16 %v388, %v387
        %v419 = vpack.c.b16 %v390, %v389
        %v420 = vpack.c.b16 %v392, %v391
        %v421 = vpack.c.b16 %v394, %v393
        %v422 = vpack.c.b16 %v396, %v395
        %v423 = vpack.c.b16 %v398, %v397
        %v424 = vpack.c.b16 %v400, %v399
        %v425 = vpack.c.b16 %v402, %v401
        %v426 = vpack.c.b16 %v404, %v403
        %v427 = vpack.c.b16 %v406, %v405
        %v428 = vpack.c.b16 %v408, %v407
        %v429 = vpack.c.b16 %v410, %v409
        %v430 = vpack.c.b16 %v412, %v411
        %v431 = vpack.c.b16 %v414, %v413
        %v432 = vpack.c.b16 %v416, %v415
        %v437 = vunpack.c.l.b16 %v342
        %v438 = vunpack.c.l.b16 %v343
        %v439 = vunpack.c.l.b16 %v344
        %v440 = vunpack.c.l.b16 %v345
        %v441 = vpack.c.b16 %v438, %v437
        %v442 = vpack.c.b16 %v440, %v439
        %vm445 = vcmask 261120
        %v447 = vsel %vm445, %v417, 0
        %v450 = vsel %vm445, %v418, 0
        %v453 = vsel %vm445, %v419, 0
        %v456 = vsel %vm445, %v420, 0
        %v459 = vsel %vm445, %v421, 0
        %v462 = vsel %vm445, %v422, 0
        %v465 = vsel %vm445, %v423, 0
        %v468 = vsel %vm445, %v424, 0
        %v471 = vsel %vm445, %v425, 0
        %v474 = vsel %vm445, %v426, 0
        %v477 = vsel %vm445, %v427, 0
        %v480 = vsel %vm445, %v428, 0
        %v483 = vsel %vm445, %v429, 0
        %v486 = vsel %vm445, %v430, 0
        %v489 = vsel %vm445, %v431, 0
        %v492 = vsel %vm445, %v432, 0
        %494 = vmatprep.subr.bf16.mxu0 0
        %495 = vmatpush1.bf16.msra.mxu0 %v441
        %496 = vmatprep.subr.bf16.mxu0 0
        %497 = vmatpush1.bf16.msra.mxu0 %v442
        %498 = vmatprep.subr.bf16.mxu0 0
        %499 = vmatpush1.bf16.msra.mxu0 0
        %500 = vmatprep.subr.bf16.mxu0 0
        %501 = vmatpush1.bf16.msra.mxu0 0
        %502 = vmatprep.subr.bf16.mxu0 0
        %503 = vmatpush1.bf16.msra.mxu0 0
        %504 = vmatprep.subr.bf16.mxu0 0
        %505 = vmatpush1.bf16.msra.mxu0 0
        %506 = vmatprep.subr.bf16.mxu0 0
        %507 = vmatpush1.bf16.msra.mxu0 0
        %508 = vmatprep.subr.bf16.mxu0 0
        %509 = vmatpush1.bf16.msra.mxu0 0
        %510 = vmatprep.subr.bf16.mxu0 0
        %511 = vmatpush1.bf16.msra.mxu0 0
        %512 = vmatprep.subr.bf16.mxu0 0
        %513 = vmatpush1.bf16.msra.mxu0 0
        %514 = vmatprep.subr.bf16.mxu0 0
        %515 = vmatpush1.bf16.msra.mxu0 0
        %516 = vmatprep.subr.bf16.mxu0 0
        %517 = vmatpush1.bf16.msra.mxu0 0
        %518 = vmatprep.subr.bf16.mxu0 0
        %519 = vmatpush1.bf16.msra.mxu0 0
        %520 = vmatprep.subr.bf16.mxu0 0
        %521 = vmatpush1.bf16.msra.mxu0 0
        %522 = vmatprep.subr.bf16.mxu0 0
        %523 = vmatpush1.bf16.msra.mxu0 0
        %524 = vmatprep.subr.bf16.mxu0 0
        %525 = vmatpush1.bf16.msra.mxu0 0
        %526 = vmatprep.mubr.bf16.mxu0 0
        %527 = vmatmul.mubr.bf16.gmra.mrb[0].mxu0 %v447
        %v528 = vpop.f32.mrb[0].mxu0
        %v529 = vadd.f32 %v351, %v528
        %v530 = vpop.f32.mrb[0].mxu0
        %v531 = vpop.f32.mrb[0].mxu0
        %v532 = vadd.f32 %v351, %v531
        %v533 = vpop.f32.mrb[0].mxu0
        %534 = vmatprep.mubr.bf16.mxu0 0
        %535 = vmatmul.mubr.bf16.gmra.mrb[0].mxu0 %v450
        %v536 = vpop.f32.mrb[0].mxu0
        %v537 = vadd.f32 %v351, %v536
        %v538 = vpop.f32.mrb[0].mxu0
        %v539 = vpop.f32.mrb[0].mxu0
        %v540 = vadd.f32 %v351, %v539
        %v541 = vpop.f32.mrb[0].mxu0
        %542 = vmatprep.mubr.bf16.mxu0 0
        %543 = vmatmul.mubr.bf16.gmra.mrb[0].mxu0 %v453
        %v544 = vpop.f32.mrb[0].mxu0
        %v545 = vadd.f32 %v351, %v544
        %v546 = vpop.f32.mrb[0].mxu0
        %v547 = vpop.f32.mrb[0].mxu0
        %v548 = vadd.f32 %v351, %v547
        %v549 = vpop.f32.mrb[0].mxu0
        %550 = vmatprep.mubr.bf16.mxu0 0
        %551 = vmatmul.mubr.bf16.gmra.mrb[0].mxu0 %v456
        %v552 = vpop.f32.mrb[0].mxu0
        %v553 = vadd.f32 %v351, %v552
        %v554 = vpop.f32.mrb[0].mxu0
        %v555 = vpop.f32.mrb[0].mxu0
        %v556 = vadd.f32 %v351, %v555
        %v557 = vpop.f32.mrb[0].mxu0
        %558 = vmatprep.mubr.bf16.mxu0 0
        %559 = vmatmul.mubr.bf16.gmra.mrb[0].mxu0 %v459
        %v560 = vpop.f32.mrb[0].mxu0
        %v561 = vadd.f32 %v351, %v560
        %v562 = vpop.f32.mrb[0].mxu0
        %v563 = vpop.f32.mrb[0].mxu0
        %v564 = vadd.f32 %v351, %v563
        %v565 = vpop.f32.mrb[0].mxu0
        %566 = vmatprep.mubr.bf16.mxu0 0
        %567 = vmatmul.mubr.bf16.gmra.mrb[0].mxu0 %v462
        %v568 = vpop.f32.mrb[0].mxu0
        %v569 = vadd.f32 %v351, %v568
        %v570 = vpop.f32.mrb[0].mxu0
        %v571 = vpop.f32.mrb[0].mxu0
        %v572 = vadd.f32 %v351, %v571
        %v573 = vpop.f32.mrb[0].mxu0
        %574 = vmatprep.mubr.bf16.mxu0 0
        %575 = vmatmul.mubr.bf16.gmra.mrb[0].mxu0 %v465
        %v576 = vpop.f32.mrb[0].mxu0
        %v577 = vadd.f32 %v351, %v576
        %v578 = vpop.f32.mrb[0].mxu0
        %v579 = vpop.f32.mrb[0].mxu0
        %v580 = vadd.f32 %v351, %v579
        %v581 = vpop.f32.mrb[0].mxu0
        %582 = vmatprep.mubr.bf16.mxu0 0
        %583 = vmatmul.mubr.bf16.gmra.mrb[0].mxu0 %v468
        %v584 = vpop.f32.mrb[0].mxu0
        %v585 = vadd.f32 %v351, %v584
        %v586 = vpop.f32.mrb[0].mxu0
        %v587 = vpop.f32.mrb[0].mxu0
        %v588 = vadd.f32 %v351, %v587
        %v589 = vpop.f32.mrb[0].mxu0
        %590 = vmatprep.mubr.bf16.mxu0 0
        %591 = vmatmul.mubr.bf16.gmra.mrb[0].mxu0 %v471
        %v592 = vpop.f32.mrb[0].mxu0
        %v593 = vadd.f32 %v351, %v592
        %v594 = vpop.f32.mrb[0].mxu0
        %v595 = vpop.f32.mrb[0].mxu0
        %v596 = vadd.f32 %v351, %v595
        %v597 = vpop.f32.mrb[0].mxu0
        %598 = vmatprep.mubr.bf16.mxu0 0
        %599 = vmatmul.mubr.bf16.gmra.mrb[0].mxu0 %v474
        %v600 = vpop.f32.mrb[0].mxu0
        %v601 = vadd.f32 %v351, %v600
        %v602 = vpop.f32.mrb[0].mxu0
        %v603 = vpop.f32.mrb[0].mxu0
        %v604 = vadd.f32 %v351, %v603
        %v605 = vpop.f32.mrb[0].mxu0
        %606 = vmatprep.mubr.bf16.mxu0 0
        %607 = vmatmul.mubr.bf16.gmra.mrb[0].mxu0 %v477
        %v608 = vpop.f32.mrb[0].mxu0
        %v609 = vadd.f32 %v351, %v608
        %v610 = vpop.f32.mrb[0].mxu0
        %v611 = vpop.f32.mrb[0].mxu0
        %v612 = vadd.f32 %v351, %v611
        %v613 = vpop.f32.mrb[0].mxu0
        %614 = vmatprep.mubr.bf16.mxu0 0
        %615 = vmatmul.mubr.bf16.gmra.mrb[0].mxu0 %v480
        %v616 = vpop.f32.mrb[0].mxu0
        %v617 = vadd.f32 %v351, %v616
        %v618 = vpop.f32.mrb[0].mxu0
        %v619 = vpop.f32.mrb[0].mxu0
        %v620 = vadd.f32 %v351, %v619
        %v621 = vpop.f32.mrb[0].mxu0
        %622 = vmatprep.mubr.bf16.mxu0 0
        %623 = vmatmul.mubr.bf16.gmra.mrb[0].mxu0 %v483
        %v624 = vpop.f32.mrb[0].mxu0
        %v625 = vadd.f32 %v351, %v624
        %v626 = vpop.f32.mrb[0].mxu0
        %v627 = vpop.f32.mrb[0].mxu0
        %v628 = vadd.f32 %v351, %v627
        %v629 = vpop.f32.mrb[0].mxu0
        %630 = vmatprep.mubr.bf16.mxu0 0
        %631 = vmatmul.mubr.bf16.gmra.mrb[0].mxu0 %v486
        %v632 = vpop.f32.mrb[0].mxu0
        %v633 = vadd.f32 %v351, %v632
        %v634 = vpop.f32.mrb[0].mxu0
        %v635 = vpop.f32.mrb[0].mxu0
        %v636 = vadd.f32 %v351, %v635
        %v637 = vpop.f32.mrb[0].mxu0
        %638 = vmatprep.mubr.bf16.mxu0 0
        %639 = vmatmul.mubr.bf16.gmra.mrb[0].mxu0 %v489
        %v640 = vpop.f32.mrb[0].mxu0
        %v641 = vadd.f32 %v351, %v640
        %v642 = vpop.f32.mrb[0].mxu0
        %v643 = vpop.f32.mrb[0].mxu0
        %v644 = vadd.f32 %v351, %v643
        %v645 = vpop.f32.mrb[0].mxu0
        %646 = vmatprep.mubr.bf16.mxu0 0
        %647 = vmatmul.mubr.bf16.gmra.mrb[0].mxu0 %v492
        %v648 = vpop.f32.mrb[0].mxu0
        %v649 = vadd.f32 %v351, %v648
        %v650 = vpop.f32.mrb[0].mxu0
        %v651 = vpop.f32.mrb[0].mxu0
        %v652 = vadd.f32 %v351, %v651
        %v653 = vpop.f32.mrb[0].mxu0
        %654 = vdwg.mxu0
        %v655 = vsub.f32 0.0, %v529
        %v656 = vsub.f32 0.0, %v532
        %v657 = vsub.f32 0.0, %v537
        %v658 = vsub.f32 0.0, %v540
        %v659 = vsub.f32 0.0, %v545
        %v660 = vsub.f32 0.0, %v548
        %v661 = vsub.f32 0.0, %v553
        %v662 = vsub.f32 0.0, %v556
        %v663 = vsub.f32 0.0, %v561
        %v664 = vsub.f32 0.0, %v564
        %v665 = vsub.f32 0.0, %v569
        %v666 = vsub.f32 0.0, %v572
        %v667 = vsub.f32 0.0, %v577
        %v668 = vsub.f32 0.0, %v580
        %v669 = vsub.f32 0.0, %v585
        %v670 = vsub.f32 0.0, %v588
        %v671 = vsub.f32 0.0, %v593
        %v672 = vsub.f32 0.0, %v596
        %v673 = vsub.f32 0.0, %v601
        %v674 = vsub.f32 0.0, %v604
        %v675 = vsub.f32 0.0, %v609
        %v676 = vsub.f32 0.0, %v612
        %v677 = vsub.f32 0.0, %v617
        %v678 = vsub.f32 0.0, %v620
        %v679 = vsub.f32 0.0, %v625
        %v680 = vsub.f32 0.0, %v628
        %v681 = vsub.f32 0.0, %v633
        %v682 = vsub.f32 0.0, %v636
        %v683 = vsub.f32 0.0, %v641
        %v684 = vsub.f32 0.0, %v644
        %v685 = vsub.f32 0.0, %v649
        %v686 = vsub.f32 0.0, %v652
        %v687 = vmul.f32 %v655, 1.442695
        %v688 = vpow.pop %v687
        %v689 = vmul.f32 %v656, 1.442695
        %v690 = vpow.pop %v689
        %v691 = vmul.f32 %v657, 1.442695
        %v692 = vpow.pop %v691
        %v693 = vmul.f32 %v658, 1.442695
        %v694 = vpow.pop %v693
        %v695 = vmul.f32 %v659, 1.442695
        %v696 = vpow.pop %v695
        %v697 = vmul.f32 %v660, 1.442695
        %v698 = vpow.pop %v697
        %v699 = vmul.f32 %v661, 1.442695
        %v700 = vpow.pop %v699
        %v701 = vmul.f32 %v662, 1.442695
        %v702 = vpow.pop %v701
        %v703 = vmul.f32 %v663, 1.442695
        %v704 = vpow.pop %v703
        %v705 = vmul.f32 %v664, 1.442695
        %v706 = vpow.pop %v705
        %v707 = vmul.f32 %v665, 1.442695
        %v708 = vpow.pop %v707
        %v709 = vmul.f32 %v666, 1.442695
        %v710 = vpow.pop %v709
        %v711 = vmul.f32 %v667, 1.442695
        %v712 = vpow.pop %v711
        %v713 = vmul.f32 %v668, 1.442695
        %v714 = vpow.pop %v713
        %v715 = vmul.f32 %v669, 1.442695
        %v716 = vpow.pop %v715
        %v717 = vmul.f32 %v670, 1.442695
        %v718 = vpow.pop %v717
        %v719 = vmul.f32 %v671, 1.442695
        %v720 = vpow.pop %v719
        %v721 = vmul.f32 %v672, 1.442695
        %v722 = vpow.pop %v721
        %v723 = vmul.f32 %v673, 1.442695
        %v724 = vpow.pop %v723
        %v725 = vmul.f32 %v674, 1.442695
        %v726 = vpow.pop %v725
        %v727 = vmul.f32 %v675, 1.442695
        %v728 = vpow.pop %v727
        %v729 = vmul.f32 %v676, 1.442695
        %v730 = vpow.pop %v729
        %v731 = vmul.f32 %v677, 1.442695
        %v732 = vpow.pop %v731
        %v733 = vmul.f32 %v678, 1.442695
        %v734 = vpow.pop %v733
        %v735 = vmul.f32 %v679, 1.442695
        %v736 = vpow.pop %v735
        %v737 = vmul.f32 %v680, 1.442695
        %v738 = vpow.pop %v737
        %v739 = vmul.f32 %v681, 1.442695
        %v740 = vpow.pop %v739
        %v741 = vmul.f32 %v682, 1.442695
        %v742 = vpow.pop %v741
        %v743 = vmul.f32 %v683, 1.442695
        %v744 = vpow.pop %v743
        %v745 = vmul.f32 %v684, 1.442695
        %v746 = vpow.pop %v745
        %v747 = vmul.f32 %v685, 1.442695
        %v748 = vpow.pop %v747
        %v749 = vmul.f32 %v686, 1.442695
        %v750 = vpow.pop %v749
        %v751 = vadd.f32 %v688, 1.0
        %v752 = vadd.f32 %v690, 1.0
        %v753 = vadd.f32 %v692, 1.0
        %v754 = vadd.f32 %v694, 1.0
        %v755 = vadd.f32 %v696, 1.0
        %v756 = vadd.f32 %v698, 1.0
        %v757 = vadd.f32 %v700, 1.0
        %v758 = vadd.f32 %v702, 1.0
        %v759 = vadd.f32 %v704, 1.0
        %v760 = vadd.f32 %v706, 1.0
        %v761 = vadd.f32 %v708, 1.0
        %v762 = vadd.f32 %v710, 1.0
        %v763 = vadd.f32 %v712, 1.0
        %v764 = vadd.f32 %v714, 1.0
        %v765 = vadd.f32 %v716, 1.0
        %v766 = vadd.f32 %v718, 1.0
        %v767 = vadd.f32 %v720, 1.0
        %v768 = vadd.f32 %v722, 1.0
        %v769 = vadd.f32 %v724, 1.0
        %v770 = vadd.f32 %v726, 1.0
        %v771 = vadd.f32 %v728, 1.0
        %v772 = vadd.f32 %v730, 1.0
        %v773 = vadd.f32 %v732, 1.0
        %v774 = vadd.f32 %v734, 1.0
        %v775 = vadd.f32 %v736, 1.0
        %v776 = vadd.f32 %v738, 1.0
        %v777 = vadd.f32 %v740, 1.0
        %v778 = vadd.f32 %v742, 1.0
        %v779 = vadd.f32 %v744, 1.0
        %v780 = vadd.f32 %v746, 1.0
        %v781 = vadd.f32 %v748, 1.0
        %v782 = vadd.f32 %v750, 1.0
        %v783 = vrcp.pop %v751
        %v784 = vrcp.pop %v752
        %v785 = vrcp.pop %v753
        %v786 = vrcp.pop %v754
        %v787 = vrcp.pop %v755
        %v788 = vrcp.pop %v756
        %v789 = vrcp.pop %v757
        %v790 = vrcp.pop %v758
        %v791 = vrcp.pop %v759
        %v792 = vrcp.pop %v760
        %v793 = vrcp.pop %v761
        %v794 = vrcp.pop %v762
        %v795 = vrcp.pop %v763
        %v796 = vrcp.pop %v764
        %v797 = vrcp.pop %v765
        %v798 = vrcp.pop %v766
        %v799 = vrcp.pop %v767
        %v800 = vrcp.pop %v768
        %v801 = vrcp.pop %v769
        %v802 = vrcp.pop %v770
        %v803 = vrcp.pop %v771
        %v804 = vrcp.pop %v772
        %v805 = vrcp.pop %v773
        %v806 = vrcp.pop %v774
        %v807 = vrcp.pop %v775
        %v808 = vrcp.pop %v776
        %v809 = vrcp.pop %v777
        %v810 = vrcp.pop %v778
        %v811 = vrcp.pop %v779
        %v812 = vrcp.pop %v780
        %v813 = vrcp.pop %v781
        %v814 = vrcp.pop %v782
        %v815 = vmul.f32 %v529, %v783
        %v816 = vmul.f32 %v532, %v784
        %v817 = vmul.f32 %v537, %v785
        %v818 = vmul.f32 %v540, %v786
        %v819 = vmul.f32 %v545, %v787
        %v820 = vmul.f32 %v548, %v788
        %v821 = vmul.f32 %v553, %v789
        %v822 = vmul.f32 %v556, %v790
        %v823 = vmul.f32 %v561, %v791
        %v824 = vmul.f32 %v564, %v792
        %v825 = vmul.f32 %v569, %v793
        %v826 = vmul.f32 %v572, %v794
        %v827 = vmul.f32 %v577, %v795
        %v828 = vmul.f32 %v580, %v796
        %v829 = vmul.f32 %v585, %v797
        %v830 = vmul.f32 %v588, %v798
        %v831 = vmul.f32 %v593, %v799
        %v832 = vmul.f32 %v596, %v800
        %v833 = vmul.f32 %v601, %v801
        %v834 = vmul.f32 %v604, %v802
        %v835 = vmul.f32 %v609, %v803
        %v836 = vmul.f32 %v612, %v804
        %v837 = vmul.f32 %v617, %v805
        %v838 = vmul.f32 %v620, %v806
        %v839 = vmul.f32 %v625, %v807
        %v840 = vmul.f32 %v628, %v808
        %v841 = vmul.f32 %v633, %v809
        %v842 = vmul.f32 %v636, %v810
        %v843 = vmul.f32 %v641, %v811
        %v844 = vmul.f32 %v644, %v812
        %v845 = vmul.f32 %v649, %v813
        %v846 = vmul.f32 %v652, %v814
        %v847 = vld [vmem:[#allocation2] sm:$0x1]
        %v848 = vadd.f32 %v815, %v816
        %v849 = vadd.f32 %v848, %v817
        %v850 = vadd.f32 %v849, %v818
        %v851 = vadd.f32 %v850, %v819
        %v852 = vadd.f32 %v851, %v820
        %v853 = vadd.f32 %v852, %v821
        %v854 = vadd.f32 %v853, %v822
        %v855 = vadd.f32 %v854, %v823
        %v856 = vadd.f32 %v855, %v824
        %v857 = vadd.f32 %v856, %v825
        %v858 = vadd.f32 %v857, %v826
        %v859 = vadd.f32 %v858, %v827
        %v860 = vadd.f32 %v859, %v828
        %v861 = vadd.f32 %v860, %v829
        %v862 = vadd.f32 %v861, %v830
        %v863 = vadd.f32 %v862, %v831
        %v864 = vadd.f32 %v863, %v832
        %v865 = vadd.f32 %v864, %v833
        %v866 = vadd.f32 %v865, %v834
        %v867 = vadd.f32 %v866, %v835
        %v868 = vadd.f32 %v867, %v836
        %v869 = vadd.f32 %v868, %v837
        %v870 = vadd.f32 %v869, %v838
        %v871 = vadd.f32 %v870, %v839
        %v872 = vadd.f32 %v871, %v840
        %v873 = vadd.f32 %v872, %v841
        %v874 = vadd.f32 %v873, %v842
        %v875 = vadd.f32 %v874, %v843
        %v876 = vadd.f32 %v875, %v844
        %v877 = vadd.f32 %v876, %v845
        %v878 = vadd.f32 %v877, %v846
        %v879 = vrot.slane %v878, 4
        %v880 = vadd.f32 %v878, %v879
        %v881 = vrot.slane %v880, 2
        %v882 = vadd.f32 %v880, %v881
        %v883 = vrot.slane %v882, 1
        %v884 = vadd.f32 %v882, %v883
        %v885 = vadd.f32 %v847, %v884
        %886 = vst [vmem:[#allocation2] sm:$0x1] %v885
        // Predicated region
        $region53: #{road_distress_forward.1} parent=47 // pred_check
          %p887 = pneg %p305
        $region54: #{road_distress_forward.1} parent=47 // pred_check_branch
          %889 = sbr.rel (%p887) target = $region56
        $region55: #{road_distress_forward.1} parent=47 // pred_region
          %v890 = vld [vmem:[#allocation2] sm:$0x1]
          %v891 = vmul.f32 %v890, 0.00390625
          %v892 = vpack.c.bf16 %v891, %v891
          %v893 = vld [vmem:[%s3] sm:$0xff]
          %v894 = vld [vmem:[%s3 + $0x8] sm:$0xff]
          %v895 = vld [vmem:[%s3 + $0x10] sm:$0xff]
          %v896 = vld [vmem:[%s3 + $0x18] sm:$0xff]
          %v897 = vld [vmem:[%s3 + $0x20] sm:$0xff]
          %v898 = vld [vmem:[%s3 + $0x28] sm:$0xff]
          %v899 = vld [vmem:[%s3 + $0x30] sm:$0xff]
          %v900 = vld [vmem:[%s3 + $0x38] sm:$0xff]
          %v901 = vld [vmem:[%s3 + $0x40] sm:$0xff]
          %v902 = vld [vmem:[%s3 + $0x48] sm:$0xff]
          %v903 = vld [vmem:[%s3 + $0x50] sm:$0xff]
          %v904 = vld [vmem:[%s3 + $0x58] sm:$0xff]
          %v905 = vld [vmem:[%s3 + $0x60] sm:$0xff]
          %v906 = vld [vmem:[%s3 + $0x68] sm:$0xff]
          %v907 = vld [vmem:[%s3 + $0x70] sm:$0xff]
          %v908 = vld [vmem:[%s3 + $0x78] sm:$0xff]
          %v909 = vld [vmem:[%s3 + $0x80] sm:$0xff]
          %v910 = vld [vmem:[%s3 + $0x88] sm:$0xff]
          %v911 = vld [vmem:[%s3 + $0x90] sm:$0xff]
          %v912 = vld [vmem:[%s3 + $0x98] sm:$0xff]
          %v913 = vld [vmem:[%s3 + $0xa0] sm:$0xff]
          %v914 = vld [vmem:[%s3 + $0xa8] sm:$0xff]
          %v915 = vld [vmem:[%s3 + $0xb0] sm:$0xff]
          %v916 = vld [vmem:[%s3 + $0xb8] sm:$0xff]
          %v917 = vld [vmem:[%s3 + $0xc0] sm:$0xff]
          %v918 = vld [vmem:[%s3 + $0xc8] sm:$0xff]
          %v919 = vld [vmem:[%s3 + $0xd0] sm:$0xff]
          %v920 = vld [vmem:[%s3 + $0xd8] sm:$0xff]
          %v921 = vld [vmem:[%s3 + $0xe0] sm:$0xff]
          %v922 = vld [vmem:[%s3 + $0xe8] sm:$0xff]
          %v923 = vld [vmem:[%s3 + $0xf0] sm:$0xff]
          %v924 = vld [vmem:[%s3 + $0xf8] sm:$0xff]
          %v925 = vld [vmem:[%s4] sm:$0xf]
          %v958 = vunpack.c.l.b16 %v893
          %v959 = vunpack.c.h.b16 %v893
          %v960 = vunpack.c.l.b16 %v894
          %v961 = vunpack.c.h.b16 %v894
          %v962 = vunpack.c.l.b16 %v895
          %v963 = vunpack.c.h.b16 %v895
          %v964 = vunpack.c.l.b16 %v896
          %v965 = vunpack.c.h.b16 %v896
          %v966 = vunpack.c.l.b16 %v897
          %v967 = vunpack.c.h.b16 %v897
          %v968 = vunpack.c.l.b16 %v898
          %v969 = vunpack.c.h.b16 %v898
          %v970 = vunpack.c.l.b16 %v899
          %v971 = vunpack.c.h.b16 %v899
          %v972 = vunpack.c.l.b16 %v900
          %v973 = vunpack.c.h.b16 %v900
          %v974 = vunpack.c.l.b16 %v901
          %v975 = vunpack.c.h.b16 %v901
          %v976 = vunpack.c.l.b16 %v902
          %v977 = vunpack.c.h.b16 %v902
          %v978 = vunpack.c.l.b16 %v903
          %v979 = vunpack.c.h.b16 %v903
          %v980 = vunpack.c.l.b16 %v904
          %v981 = vunpack.c.h.b16 %v904
          %v982 = vunpack.c.l.b16 %v905
          %v983 = vunpack.c.h.b16 %v905
          %v984 = vunpack.c.l.b16 %v906
          %v985 = vunpack.c.h.b16 %v906
          %v986 = vunpack.c.l.b16 %v907
          %v987 = vunpack.c.h.b16 %v907
          %v988 = vunpack.c.l.b16 %v908
          %v989 = vunpack.c.h.b16 %v908
          %v990 = vunpack.c.l.b16 %v909
          %v991 = vunpack.c.h.b16 %v909
          %v992 = vunpack.c.l.b16 %v910
          %v993 = vunpack.c.h.b16 %v910
          %v994 = vunpack.c.l.b16 %v911
          %v995 = vunpack.c.h.b16 %v911
          %v996 = vunpack.c.l.b16 %v912
          %v997 = vunpack.c.h.b16 %v912
          %v998 = vunpack.c.l.b16 %v913
          %v999 = vunpack.c.h.b16 %v913
          %v1000 = vunpack.c.l.b16 %v914
          %v1001 = vunpack.c.h.b16 %v914
          %v1002 = vunpack.c.l.b16 %v915
          %v1003 = vunpack.c.h.b16 %v915
          %v1004 = vunpack.c.l.b16 %v916
          %v1005 = vunpack.c.h.b16 %v916
          %v1006 = vunpack.c.l.b16 %v917
          %v1007 = vunpack.c.h.b16 %v917
          %v1008 = vunpack.c.l.b16 %v918
          %v1009 = vunpack.c.h.b16 %v918
          %v1010 = vunpack.c.l.b16 %v919
          %v1011 = vunpack.c.h.b16 %v919
          %v1012 = vunpack.c.l.b16 %v920
          %v1013 = vunpack.c.h.b16 %v920
          %v1014 = vunpack.c.l.b16 %v921
          %v1015 = vunpack.c.h.b16 %v921
          %v1016 = vunpack.c.l.b16 %v922
          %v1017 = vunpack.c.h.b16 %v922
          %v1018 = vunpack.c.l.b16 %v923
          %v1019 = vunpack.c.h.b16 %v923
          %v1020 = vunpack.c.l.b16 %v924
          %v1021 = vunpack.c.h.b16 %v924
          %v1022 = vpack.c.b16 %v962, %v958
          %v1023 = vpack.c.b16 %v963, %v959
          %v1024 = vpack.c.b16 %v964, %v960
          %v1025 = vpack.c.b16 %v965, %v961
          %v1026 = vpack.c.b16 %v970, %v966
          %v1027 = vpack.c.b16 %v971, %v967
          %v1028 = vpack.c.b16 %v972, %v968
          %v1029 = vpack.c.b16 %v973, %v969
          %v1030 = vpack.c.b16 %v978, %v974
          %v1031 = vpack.c.b16 %v979, %v975
          %v1032 = vpack.c.b16 %v980, %v976
          %v1033 = vpack.c.b16 %v981, %v977
          %v1034 = vpack.c.b16 %v986, %v982
          %v1035 = vpack.c.b16 %v987, %v983
          %v1036 = vpack.c.b16 %v988, %v984
          %v1037 = vpack.c.b16 %v989, %v985
          %v1038 = vpack.c.b16 %v994, %v990
          %v1039 = vpack.c.b16 %v995, %v991
          %v1040 = vpack.c.b16 %v996, %v992
          %v1041 = vpack.c.b16 %v997, %v993
          %v1042 = vpack.c.b16 %v1002, %v998
          %v1043 = vpack.c.b16 %v1003, %v999
          %v1044 = vpack.c.b16 %v1004, %v1000
          %v1045 = vpack.c.b16 %v1005, %v1001
          %v1046 = vpack.c.b16 %v1010, %v1006
          %v1047 = vpack.c.b16 %v1011, %v1007
          %v1048 = vpack.c.b16 %v1012, %v1008
          %v1049 = vpack.c.b16 %v1013, %v1009
          %v1050 = vpack.c.b16 %v1018, %v1014
          %v1051 = vpack.c.b16 %v1019, %v1015
          %v1052 = vpack.c.b16 %v1020, %v1016
          %v1053 = vpack.c.b16 %v1021, %v1017
          %v1087 = vlaneseq
          %v1088 = vshrl.u32 %v1087, 7
          %v1089 = vsub.s32 0, %v1088
          %v1090 = vrot.slane %v925, %v1089
          %v1091 = vlaneseq
          %v1092 = vshrl.u32 %v1091, 7
          %v1093 = vsub.s32 1, %v1092
          %v1094 = vrot.slane %v925, %v1093
          %v1095 = vlaneseq
          %v1096 = vshrl.u32 %v1095, 7
          %v1097 = vsub.s32 2, %v1096
          %v1098 = vrot.slane %v925, %v1097
          %v1099 = vlaneseq
          %v1100 = vshrl.u32 %v1099, 7
          %v1101 = vsub.s32 3, %v1100
          %v1102 = vrot.slane %v925, %v1101
          %1107 = vmatprep.subr.bf16.mxu0 %v1023
          %1108 = vmatpush1.bf16.msra.mxu0 %v1022
          %1109 = vmatprep.subr.bf16.mxu0 %v1027
          %1110 = vmatpush1.bf16.msra.mxu0 %v1026
          %1111 = vmatprep.subr.bf16.mxu0 %v1031
          %1112 = vmatpush1.bf16.msra.mxu0 %v1030
          %1113 = vmatprep.subr.bf16.mxu0 %v1035
          %1114 = vmatpush1.bf16.msra.mxu0 %v1034
          %1115 = vmatprep.subr.bf16.mxu0 %v1039
          %1116 = vmatpush1.bf16.msra.mxu0 %v1038
          %1117 = vmatprep.subr.bf16.mxu0 %v1043
          %1118 = vmatpush1.bf16.msra.mxu0 %v1042
          %1119 = vmatprep.subr.bf16.mxu0 %v1047
          %1120 = vmatpush1.bf16.msra.mxu0 %v1046
          %1121 = vmatprep.subr.bf16.mxu0 %v1051
          %1122 = vmatpush1.bf16.msra.mxu0 %v1050
          %1123 = vmatprep.subr.bf16.mxu0 0
          %1124 = vmatpush1.bf16.msra.mxu0 0
          %1125 = vmatprep.subr.bf16.mxu0 0
          %1126 = vmatpush1.bf16.msra.mxu0 0
          %1127 = vmatprep.subr.bf16.mxu0 0
          %1128 = vmatpush1.bf16.msra.mxu0 0
          %1129 = vmatprep.subr.bf16.mxu0 0
          %1130 = vmatpush1.bf16.msra.mxu0 0
          %1131 = vmatprep.subr.bf16.mxu0 0
          %1132 = vmatpush1.bf16.msra.mxu0 0
          %1133 = vmatprep.subr.bf16.mxu0 0
          %1134 = vmatpush1.bf16.msra.mxu0 0
          %1135 = vmatprep.subr.bf16.mxu0 0
          %1136 = vmatpush1.bf16.msra.mxu0 0
          %1137 = vmatprep.subr.bf16.mxu0 0
          %1138 = vmatpush1.bf16.msra.mxu0 0
          %1139 = vmatprep.mubr.bf16.mxu0 0
          %1140 = vmatmul.mubr.bf16.gmra.mrb[0].mxu0 %v892
          %v1141 = vpop.f32.mrb[0].mxu0
          %v1142 = vadd.f32 %v1090, %v1141
          %v1143 = vpop.f32.mrb[0].mxu0
          %v1144 = vadd.f32 %v1094, %v1143
          %v1145 = vpop.f32.mrb[0].mxu0
          %v1146 = vpop.f32.mrb[0].mxu0
          %1147 = vdwg.mxu0
          %1148 = vmatprep.subr.bf16.mxu0 %v1025
          %1149 = vmatpush1.bf16.msra.mxu0 %v1024
          %1150 = vmatprep.subr.bf16.mxu0 %v1029
          %1151 = vmatpush1.bf16.msra.mxu0 %v1028
          %1152 = vmatprep.subr.bf16.mxu0 %v1033
          %1153 = vmatpush1.bf16.msra.mxu0 %v1032
          %1154 = vmatprep.subr.bf16.mxu0 %v1037
          %1155 = vmatpush1.bf16.msra.mxu0 %v1036
          %1156 = vmatprep.subr.bf16.mxu0 %v1041
          %1157 = vmatpush1.bf16.msra.mxu0 %v1040
          %1158 = vmatprep.subr.bf16.mxu0 %v1045
          %1159 = vmatpush1.bf16.msra.mxu0 %v1044
          %1160 = vmatprep.subr.bf16.mxu0 %v1049
          %1161 = vmatpush1.bf16.msra.mxu0 %v1048
          %1162 = vmatprep.subr.bf16.mxu0 %v1053
          %1163 = vmatpush1.bf16.msra.mxu0 %v1052
          %1164 = vmatprep.subr.bf16.mxu0 0
          %1165 = vmatpush1.bf16.msra.mxu0 0
          %1166 = vmatprep.subr.bf16.mxu0 0
          %1167 = vmatpush1.bf16.msra.mxu0 0
          %1168 = vmatprep.subr.bf16.mxu0 0
          %1169 = vmatpush1.bf16.msra.mxu0 0
          %1170 = vmatprep.subr.bf16.mxu0 0
          %1171 = vmatpush1.bf16.msra.mxu0 0
          %1172 = vmatprep.subr.bf16.mxu0 0
          %1173 = vmatpush1.bf16.msra.mxu0 0
          %1174 = vmatprep.subr.bf16.mxu0 0
          %1175 = vmatpush1.bf16.msra.mxu0 0
          %1176 = vmatprep.subr.bf16.mxu0 0
          %1177 = vmatpush1.bf16.msra.mxu0 0
          %1178 = vmatprep.subr.bf16.mxu0 0
          %1179 = vmatpush1.bf16.msra.mxu0 0
          %1180 = vmatprep.mubr.bf16.mxu0 0
          %1181 = vmatmul.mubr.bf16.gmra.mrb[0].mxu0 %v892
          %v1182 = vpop.f32.mrb[0].mxu0
          %v1183 = vadd.f32 %v1098, %v1182
          %v1184 = vpop.f32.mrb[0].mxu0
          %v1185 = vadd.f32 %v1102, %v1184
          %v1186 = vpop.f32.mrb[0].mxu0
          %v1187 = vpop.f32.mrb[0].mxu0
          %1188 = vdwg.mxu0
          %v1189 = vmax.f32 %v1142, 0.0
          %v1190 = vmax.f32 %v1144, 0.0
          %v1191 = vmax.f32 %v1183, 0.0
          %v1192 = vmax.f32 %v1185, 0.0
          %v1193 = vpack.c.bf16 %v1189, %v1189
          %v1194 = vpack.c.bf16 %v1190, %v1190
          %v1195 = vpack.c.bf16 %v1191, %v1191
          %v1196 = vpack.c.bf16 %v1192, %v1192
          %v1197 = vld [vmem:[%s5] sm:$0xf]
          %v1198 = vld [vmem:[%s5 + $0x4] sm:$0xf]
          %v1199 = vld [vmem:[%s5 + $0x8] sm:$0xf]
          %v1200 = vld [vmem:[%s5 + $0xc] sm:$0xf]
          %v1201 = vld [vmem:[%s5 + $0x10] sm:$0xf]
          %v1202 = vld [vmem:[%s5 + $0x14] sm:$0xf]
          %v1203 = vld [vmem:[%s5 + $0x18] sm:$0xf]
          %v1204 = vld [vmem:[%s5 + $0x1c] sm:$0xf]
          %v1205 = vld [vmem:[%s5 + $0x20] sm:$0xf]
          %v1206 = vld [vmem:[%s5 + $0x24] sm:$0xf]
          %v1207 = vld [vmem:[%s5 + $0x28] sm:$0xf]
          %v1208 = vld [vmem:[%s5 + $0x2c] sm:$0xf]
          %v1209 = vld [vmem:[%s5 + $0x30] sm:$0xf]
          %v1210 = vld [vmem:[%s5 + $0x34] sm:$0xf]
          %v1211 = vld [vmem:[%s5 + $0x38] sm:$0xf]
          %v1212 = vld [vmem:[%s5 + $0x3c] sm:$0xf]
          %v1213 = vld [vmem:[%s5 + $0x40] sm:$0xf]
          %v1214 = vld [vmem:[%s5 + $0x44] sm:$0xf]
          %v1215 = vld [vmem:[%s5 + $0x48] sm:$0xf]
          %v1216 = vld [vmem:[%s5 + $0x4c] sm:$0xf]
          %v1217 = vld [vmem:[%s5 + $0x50] sm:$0xf]
          %v1218 = vld [vmem:[%s5 + $0x54] sm:$0xf]
          %v1219 = vld [vmem:[%s5 + $0x58] sm:$0xf]
          %v1220 = vld [vmem:[%s5 + $0x5c] sm:$0xf]
          %v1221 = vld [vmem:[%s5 + $0x60] sm:$0xf]
          %v1222 = vld [vmem:[%s5 + $0x64] sm:$0xf]
          %v1223 = vld [vmem:[%s5 + $0x68] sm:$0xf]
          %v1224 = vld [vmem:[%s5 + $0x6c] sm:$0xf]
          %v1225 = vld [vmem:[%s5 + $0x70] sm:$0xf]
          %v1226 = vld [vmem:[%s5 + $0x74] sm:$0xf]
          %v1227 = vld [vmem:[%s5 + $0x78] sm:$0xf]
          %v1228 = vld [vmem:[%s5 + $0x7c] sm:$0xf]
          %v1229 = vld [vmem:[%s5 + $0x80] sm:$0xf]
          %v1230 = vld [vmem:[%s5 + $0x84] sm:$0xf]
          %v1231 = vld [vmem:[%s5 + $0x88] sm:$0xf]
          %v1232 = vld [vmem:[%s5 + $0x8c] sm:$0xf]
          %v1233 = vld [vmem:[%s5 + $0x90] sm:$0xf]
          %v1234 = vld [vmem:[%s5 + $0x94] sm:$0xf]
          %v1235 = vld [vmem:[%s5 + $0x98] sm:$0xf]
          %v1236 = vld [vmem:[%s5 + $0x9c] sm:$0xf]
          %v1237 = vld [vmem:[%s5 + $0xa0] sm:$0xf]
          %v1238 = vld [vmem:[%s5 + $0xa4] sm:$0xf]
          %v1239 = vld [vmem:[%s5 + $0xa8] sm:$0xf]
          %v1240 = vld [vmem:[%s5 + $0xac] sm:$0xf]
          %v1241 = vld [vmem:[%s5 + $0xb0] sm:$0xf]
          %v1242 = vld [vmem:[%s5 + $0xb4] sm:$0xf]
          %v1243 = vld [vmem:[%s5 + $0xb8] sm:$0xf]
          %v1244 = vld [vmem:[%s5 + $0xbc] sm:$0xf]
          %v1245 = vld [vmem:[%s5 + $0xc0] sm:$0xf]
          %v1246 = vld [vmem:[%s5 + $0xc4] sm:$0xf]
          %v1247 = vld [vmem:[%s5 + $0xc8] sm:$0xf]
          %v1248 = vld [vmem:[%s5 + $0xcc] sm:$0xf]
          %v1249 = vld [vmem:[%s5 + $0xd0] sm:$0xf]
          %v1250 = vld [vmem:[%s5 + $0xd4] sm:$0xf]
          %v1251 = vld [vmem:[%s5 + $0xd8] sm:$0xf]
          %v1252 = vld [vmem:[%s5 + $0xdc] sm:$0xf]
          %v1253 = vld [vmem:[%s5 + $0xe0] sm:$0xf]
          %v1254 = vld [vmem:[%s5 + $0xe4] sm:$0xf]
          %v1255 = vld [vmem:[%s5 + $0xe8] sm:$0xf]
          %v1256 = vld [vmem:[%s5 + $0xec] sm:$0xf]
          %v1257 = vld [vmem:[%s5 + $0xf0] sm:$0xf]
          %v1258 = vld [vmem:[%s5 + $0xf4] sm:$0xf]
          %v1259 = vld [vmem:[%s5 + $0xf8] sm:$0xf]
          %v1260 = vld [vmem:[%s5 + $0xfc] sm:$0xf]
          %v1261 = vld [vmem:[%s6] sm:$0x1]
          %v1326 = vunpack.c.l.b16 %v1197
          %v1327 = vunpack.c.l.b16 %v1198
          %v1328 = vunpack.c.l.b16 %v1199
          %v1329 = vunpack.c.l.b16 %v1200
          %v1330 = vunpack.c.l.b16 %v1201
          %v1331 = vunpack.c.l.b16 %v1202
          %v1332 = vunpack.c.l.b16 %v1203
          %v1333 = vunpack.c.l.b16 %v1204
          %v1334 = vunpack.c.l.b16 %v1205
          %v1335 = vunpack.c.l.b16 %v1206
          %v1336 = vunpack.c.l.b16 %v1207
          %v1337 = vunpack.c.l.b16 %v1208
          %v1338 = vunpack.c.l.b16 %v1209
          %v1339 = vunpack.c.l.b16 %v1210
          %v1340 = vunpack.c.l.b16 %v1211
          %v1341 = vunpack.c.l.b16 %v1212
          %v1342 = vunpack.c.l.b16 %v1213
          %v1343 = vunpack.c.l.b16 %v1214
          %v1344 = vunpack.c.l.b16 %v1215
          %v1345 = vunpack.c.l.b16 %v1216
          %v1346 = vunpack.c.l.b16 %v1217
          %v1347 = vunpack.c.l.b16 %v1218
          %v1348 = vunpack.c.l.b16 %v1219
          %v1349 = vunpack.c.l.b16 %v1220
          %v1350 = vunpack.c.l.b16 %v1221
          %v1351 = vunpack.c.l.b16 %v1222
          %v1352 = vunpack.c.l.b16 %v1223
          %v1353 = vunpack.c.l.b16 %v1224
          %v1354 = vunpack.c.l.b16 %v1225
          %v1355 = vunpack.c.l.b16 %v1226
          %v1356 = vunpack.c.l.b16 %v1227
          %v1357 = vunpack.c.l.b16 %v1228
          %v1358 = vunpack.c.l.b16 %v1229
          %v1359 = vunpack.c.l.b16 %v1230
          %v1360 = vunpack.c.l.b16 %v1231
          %v1361 = vunpack.c.l.b16 %v1232
          %v1362 = vunpack.c.l.b16 %v1233
          %v1363 = vunpack.c.l.b16 %v1234
          %v1364 = vunpack.c.l.b16 %v1235
          %v1365 = vunpack.c.l.b16 %v1236
          %v1366 = vunpack.c.l.b16 %v1237
          %v1367 = vunpack.c.l.b16 %v1238
          %v1368 = vunpack.c.l.b16 %v1239
          %v1369 = vunpack.c.l.b16 %v1240
          %v1370 = vunpack.c.l.b16 %v1241
          %v1371 = vunpack.c.l.b16 %v1242
          %v1372 = vunpack.c.l.b16 %v1243
          %v1373 = vunpack.c.l.b16 %v1244
          %v1374 = vunpack.c.l.b16 %v1245
          %v1375 = vunpack.c.l.b16 %v1246
          %v1376 = vunpack.c.l.b16 %v1247
          %v1377 = vunpack.c.l.b16 %v1248
          %v1378 = vunpack.c.l.b16 %v1249
          %v1379 = vunpack.c.l.b16 %v1250
          %v1380 = vunpack.c.l.b16 %v1251
          %v1381 = vunpack.c.l.b16 %v1252
          %v1382 = vunpack.c.l.b16 %v1253
          %v1383 = vunpack.c.l.b16 %v1254
          %v1384 = vunpack.c.l.b16 %v1255
          %v1385 = vunpack.c.l.b16 %v1256
          %v1386 = vunpack.c.l.b16 %v1257
          %v1387 = vunpack.c.l.b16 %v1258
          %v1388 = vunpack.c.l.b16 %v1259
          %v1389 = vunpack.c.l.b16 %v1260
          %v1390 = vpack.c.b16 %v1327, %v1326
          %v1391 = vpack.c.b16 %v1329, %v1328
          %v1392 = vpack.c.b16 %v1331, %v1330
          %v1393 = vpack.c.b16 %v1333, %v1332
          %v1394 = vpack.c.b16 %v1335, %v1334
          %v1395 = vpack.c.b16 %v1337, %v1336
          %v1396 = vpack.c.b16 %v1339, %v1338
          %v1397 = vpack.c.b16 %v1341, %v1340
          %v1398 = vpack.c.b16 %v1343, %v1342
          %v1399 = vpack.c.b16 %v1345, %v1344
          %v1400 = vpack.c.b16 %v1347, %v1346
          %v1401 = vpack.c.b16 %v1349, %v1348
          %v1402 = vpack.c.b16 %v1351, %v1350
          %v1403 = vpack.c.b16 %v1353, %v1352
          %v1404 = vpack.c.b16 %v1355, %v1354
          %v1405 = vpack.c.b16 %v1357, %v1356
          %v1406 = vpack.c.b16 %v1359, %v1358
          %v1407 = vpack.c.b16 %v1361, %v1360
          %v1408 = vpack.c.b16 %v1363, %v1362
          %v1409 = vpack.c.b16 %v1365, %v1364
          %v1410 = vpack.c.b16 %v1367, %v1366
          %v1411 = vpack.c.b16 %v1369, %v1368
          %v1412 = vpack.c.b16 %v1371, %v1370
          %v1413 = vpack.c.b16 %v1373, %v1372
          %v1414 = vpack.c.b16 %v1375, %v1374
          %v1415 = vpack.c.b16 %v1377, %v1376
          %v1416 = vpack.c.b16 %v1379, %v1378
          %v1417 = vpack.c.b16 %v1381, %v1380
          %v1418 = vpack.c.b16 %v1383, %v1382
          %v1419 = vpack.c.b16 %v1385, %v1384
          %v1420 = vpack.c.b16 %v1387, %v1386
          %v1421 = vpack.c.b16 %v1389, %v1388
          %1454 = vmatprep.subr.bf16.mxu0 0
          %1455 = vmatpush1.bf16.msra.mxu0 %v1390
          %1456 = vmatprep.subr.bf16.mxu0 0
          %1457 = vmatpush1.bf16.msra.mxu0 %v1391
          %1458 = vmatprep.subr.bf16.mxu0 0
          %1459 = vmatpush1.bf16.msra.mxu0 %v1392
          %1460 = vmatprep.subr.bf16.mxu0 0
          %1461 = vmatpush1.bf16.msra.mxu0 %v1393
          %1462 = vmatprep.subr.bf16.mxu0 0
          %1463 = vmatpush1.bf16.msra.mxu0 %v1394
          %1464 = vmatprep.subr.bf16.mxu0 0
          %1465 = vmatpush1.bf16.msra.mxu0 %v1395
          %1466 = vmatprep.subr.bf16.mxu0 0
          %1467 = vmatpush1.bf16.msra.mxu0 %v1396
          %1468 = vmatprep.subr.bf16.mxu0 0
          %1469 = vmatpush1.bf16.msra.mxu0 %v1397
          %1470 = vmatprep.subr.bf16.mxu0 0
          %1471 = vmatpush1.bf16.msra.mxu0 %v1398
          %1472 = vmatprep.subr.bf16.mxu0 0
          %1473 = vmatpush1.bf16.msra.mxu0 %v1399
          %1474 = vmatprep.subr.bf16.mxu0 0
          %1475 = vmatpush1.bf16.msra.mxu0 %v1400
          %1476 = vmatprep.subr.bf16.mxu0 0
          %1477 = vmatpush1.bf16.msra.mxu0 %v1401
          %1478 = vmatprep.subr.bf16.mxu0 0
          %1479 = vmatpush1.bf16.msra.mxu0 %v1402
          %1480 = vmatprep.subr.bf16.mxu0 0
          %1481 = vmatpush1.bf16.msra.mxu0 %v1403
          %1482 = vmatprep.subr.bf16.mxu0 0
          %1483 = vmatpush1.bf16.msra.mxu0 %v1404
          %1484 = vmatprep.subr.bf16.mxu0 0
          %1485 = vmatpush1.bf16.msra.mxu0 %v1405
          %1486 = vmatprep.mubr.bf16.mxu0 %v1194
          %1487 = vmatmul.mubr.bf16.gmra.mrb[0].mxu0 %v1193
          %v1488 = vpop.f32.mrb[0].mxu0
          %v1489 = vadd.f32 %v1261, %v1488
          %v1490 = vpop.f32.mrb[0].mxu0
          %v1491 = vpop.f32.mrb[0].mxu0
          %v1492 = vpop.f32.mrb[0].mxu0
          %1493 = vdwg.mxu0
          %1494 = vmatprep.subr.bf16.mxu0 0
          %1495 = vmatpush1.bf16.msra.mxu0 %v1406
          %1496 = vmatprep.subr.bf16.mxu0 0
          %1497 = vmatpush1.bf16.msra.mxu0 %v1407
          %1498 = vmatprep.subr.bf16.mxu0 0
          %1499 = vmatpush1.bf16.msra.mxu0 %v1408
          %1500 = vmatprep.subr.bf16.mxu0 0
          %1501 = vmatpush1.bf16.msra.mxu0 %v1409
          %1502 = vmatprep.subr.bf16.mxu0 0
          %1503 = vmatpush1.bf16.msra.mxu0 %v1410
          %1504 = vmatprep.subr.bf16.mxu0 0
          %1505 = vmatpush1.bf16.msra.mxu0 %v1411
          %1506 = vmatprep.subr.bf16.mxu0 0
          %1507 = vmatpush1.bf16.msra.mxu0 %v1412
          %1508 = vmatprep.subr.bf16.mxu0 0
          %1509 = vmatpush1.bf16.msra.mxu0 %v1413
          %1510 = vmatprep.subr.bf16.mxu0 0
          %1511 = vmatpush1.bf16.msra.mxu0 %v1414
          %1512 = vmatprep.subr.bf16.mxu0 0
          %1513 = vmatpush1.bf16.msra.mxu0 %v1415
          %1514 = vmatprep.subr.bf16.mxu0 0
          %1515 = vmatpush1.bf16.msra.mxu0 %v1416
          %1516 = vmatprep.subr.bf16.mxu0 0
          %1517 = vmatpush1.bf16.msra.mxu0 %v1417
          %1518 = vmatprep.subr.bf16.mxu0 0
          %1519 = vmatpush1.bf16.msra.mxu0 %v1418
          %1520 = vmatprep.subr.bf16.mxu0 0
          %1521 = vmatpush1.bf16.msra.mxu0 %v1419
          %1522 = vmatprep.subr.bf16.mxu0 0
          %1523 = vmatpush1.bf16.msra.mxu0 %v1420
          %1524 = vmatprep.subr.bf16.mxu0 0
          %1525 = vmatpush1.bf16.msra.mxu0 %v1421
          %1526 = vmatprep.mubr.bf16.mxu0 %v1196
          %1527 = vmatmul.mubr.bf16.gmra.mrb[0].mxu0 %v1195
          %v1528 = vpop.f32.mrb[0].mxu0
          %v1529 = vadd.f32 %v1489, %v1528
          %v1530 = vpop.f32.mrb[0].mxu0
          %v1531 = vpop.f32.mrb[0].mxu0
          %v1532 = vpop.f32.mrb[0].mxu0
          %1533 = vdwg.mxu0
          %1534 = vst [vmem:[%s293] sm:$0x1] %v1529
        $region56: #{road_distress_forward.1} parent=47 // pred_fallthru
          _
        %s1535 = sand.u32 %s195, 1
        %s1536 = scalar_lea.sflag [#allocation4], %s1535
        %s1537 = sand.u32 %s195, 1
        %s1538 = scalar_lea.vmem [#allocation3], %s1537
        // Predicated region
        $region57: #{road_distress_forward.1} parent=47 // pred_check
          %p1539 = pneg %p205
        $region58: #{road_distress_forward.1} parent=47 // pred_check_branch
          %1541 = sbr.rel (%p1539) target = $region60
        $region59: #{road_distress_forward.1} parent=47 // pred_region
          %s1543 = ssub.s32 16, 16
          %1544 = vsyncadd %s1536, %s1543
          %s1545 = smul.addr %s25, 16
          %s1546 = scalar_lea.hbm %s7, %s1545
          %s1548 = sshll.u32 %s1538, 4
          %s1549 = int_to_ptr.vmem [resolvable:$true] %s1548
          %1551 = dma.vmem_to_hbm [thread:$0]  %s1549, 16, %s1546, %s1536
        $region60: #{road_distress_forward.1} parent=47 // pred_fallthru
          _
      $region48: #{road_distress_forward.1} parent=5 // pred_fallthru
        _
      %p1552 = scmp.le.s32.totalorder 2, %s16
      // Predicated region
      $region61: #{road_distress_forward.1} parent=5 // pred_check
        %p1553 = pneg %p1552
      $region62: #{road_distress_forward.1} parent=5 // pred_check_branch
        %1555 = sbr.rel (%p1553) target = $region64
      $region63: #{road_distress_forward.1} parent=5 // pred_region
        %s1556 = ssub.s32 %s16, 2
        // Predicated region
        $region65: #{road_distress_forward.1} parent=63 // pred_check
          %p1557 = pneg %p211
        $region66: #{road_distress_forward.1} parent=63 // pred_check_branch
          %1559 = sbr.rel (%p1557) target = $region68
        $region67: #{road_distress_forward.1} parent=63 // pred_region
          %s1560 = sand.u32 %s196, 1
          %s1561 = scalar_lea.sflag [#allocation4], %s1560
          %s1562 = sand.u32 %s196, 1
          %s1563 = scalar_lea.vmem [#allocation3], %s1562
          %1564 = dma.done %s1561, 16
        $region68: #{road_distress_forward.1} parent=63 // pred_fallthru
          _
      $region64: #{road_distress_forward.1} parent=5 // pred_fallthru
        _
    $region6: #{road_distress_forward.1} parent=1 // loop_footer
      %s20 = sadd.s32 1, %s16
    $region7: #{road_distress_forward.1} parent=1 // loop_footer_branch
      %15 = sbr.rel target = $region3
    $region8: #{road_distress_forward.1} parent=1 // loop_exit
      _
    %1565 = vsyncpa [#allocation4], 1
    %s1566 = scalar_lea.sflag [#allocation4], 1
    %1567 = vsyncpa %s1566, 1

</llo_original>
